<compile_context>
chip_gen: v7x
topology: tpu7x:2x2x1
jax: 0.10.0
libtpu: 0.0.40
codegen_flags: <defaults>
</compile_context>

<pallas_src>
import functools
import math

import jax
import jax.numpy as jnp
from jax import lax
from jax.experimental import pallas as pl
from jax.experimental.pallas import tpu as pltpu


def _mha_kernel(q_ref, k_ref, v_ref,
                wq_ref, bq_ref, wk_ref, bk_ref, wv_ref, bv_ref, wo_ref, bo_ref,
                o_ref,
                qp_ref, kp_ref, vp_ref, head_ref,
                *, num_heads: int, d_k: int, block_b: int, seq_len: int,
                approx_recip: bool):
    """One batch block (block_b sequences) per grid step."""
    d_model = num_heads * d_k
    rows = block_b * seq_len
    scale = 1.0 / math.sqrt(float(d_k))
    op_dtype = qp_ref.dtype            # MXU operand dtype (bf16 by default)

    # Fuse batch*seq into one big row dim so each projection is one MXU matmul.
    xq = q_ref[...].reshape(rows, d_model).astype(op_dtype)
    xk = k_ref[...].reshape(rows, d_model).astype(op_dtype)
    xv = v_ref[...].reshape(rows, d_model).astype(op_dtype)

    bq = bq_ref[...].astype(jnp.float32)
    bk = bk_ref[...].astype(jnp.float32)
    bv = bv_ref[...].astype(jnp.float32)
    bo = bo_ref[...].astype(jnp.float32)

    # Linear projections (MXU, op_dtype operands, f32 accumulation). 1/sqrt(d_k)
    # is folded into the projected q once (O(rows*D)) instead of scaling every
    # (S, S) score matrix per head. Results parked in VMEM scratch (bounded
    # vreg live ranges across the batch/head loops).
    qp_ref[...] = ((jnp.dot(xq, wq_ref[...], preferred_element_type=jnp.float32) + bq)
                   * scale).astype(op_dtype)
    kp_ref[...] = (jnp.dot(xk, wk_ref[...], preferred_element_type=jnp.float32)
                   + bk).astype(op_dtype)
    vp_ref[...] = (jnp.dot(xv, wv_ref[...], preferred_element_type=jnp.float32)
                   + bv).astype(op_dtype)

    # Contract the last dims of q and k -> (S, S) without an explicit k transpose
    # (lowers to a transposed-RHS MXU matmul, no per-head XLU relayout).
    dn = (((1,), (1,)), ((), ()))

    def batch_body(b, carry):
        r0 = b * seq_len
        if seq_len % 8 == 0:
            r0 = pl.multiple_of(r0, 8)
        row_slc = pl.ds(r0, seq_len)
        # Static head loop: every lane-dim slice has a static offset.
        for h in range(num_heads):
            lo = h * d_k
            qh = qp_ref[row_slc, lo:lo + d_k]          # (S, d_k)
            kh = kp_ref[row_slc, lo:lo + d_k]          # (S, d_k)
            vh = vp_ref[row_slc, lo:lo + d_k]          # (S, d_k)

            scores = lax.dot_general(qh, kh, dimension_numbers=dn,
                                     preferred_element_type=jnp.float32)  # (S, S)

            # Numerically stable softmax; denominator reciprocal on the EUP.
            m = jnp.max(scores, axis=-1, keepdims=True)
            e = jnp.exp(scores - m)
            s = jnp.sum(e, axis=-1, keepdims=True)
            if approx_recip:
                probs = e * pl.reciprocal(s, approx=True)
            else:
                probs = e / s

            head_out = jnp.dot(probs.astype(op_dtype), vh,
                               preferred_element_type=jnp.float32)         # (S, d_k)
            # Park the head result in its slot of the concatenated head buffer;
            # the output projection happens once for the whole block below.
            head_ref[row_slc, lo:lo + d_k] = head_out.astype(op_dtype)
        return carry

    lax.fori_loop(0, block_b, batch_body, 0)

    # Single fused output projection for the whole batch block (full-K matmul).
    out = jnp.dot(head_ref[...], wo_ref[...], preferred_element_type=jnp.float32) + bo
    o_ref[...] = out.reshape(block_b, seq_len, d_model).astype(o_ref.dtype)


def _physical_vmem_bytes():
    try:
        info = pltpu.get_tpu_info()
        for attr in ("vmem_capacity_bytes", "vmem_bytes", "vmem_size_bytes"):
            v = getattr(info, attr, None)
            if v:
                return int(v)
    except Exception:
        pass
    return 64 << 20   # conservative (v7x-sized) fallback


def _num_tensorcores():
    try:
        info = pltpu.get_tpu_info()
        for attr in ("num_cores", "num_tensorcores", "tensorcore_count", "cores_per_chip"):
            v = getattr(info, attr, None)
            if isinstance(v, int) and v > 0:
                return v
    except Exception:
        pass
    try:
        v = getattr(jax.devices()[0], "num_cores", None)
        if isinstance(v, int) and v > 0:
            return v
    except Exception:
        pass
    return 1


def _pick_block_b(n, s, d, *, io_itemsize, w_itemsize, op_itemsize, num_cores,
                  budget_bytes):
    """Largest divisor of n whose VMEM footprint fits the budget; on multi-TC
    chips keep >= num_cores grid steps so dimension_semantics=("parallel",)
    has work for every TensorCore."""
    # Grid-invariant cost: 4 (D, D) weights + 4 (1, D) f32 biases, double-buffered.
    fixed = 2 * (4 * d * d * w_itemsize + 4 * d * 4)
    best = 1
    for cand in range(1, n + 1):
        if n % cand:
            continue
        steps = n // cand
        if num_cores > 1 and n >= num_cores and steps < num_cores:
            continue
        rows = cand * s
        io_bytes = 2 * 4 * rows * d * io_itemsize     # 3 in + 1 out, double-buffered
        scratch = 4 * rows * d * op_itemsize          # qp/kp/vp/head VMEM scratch
        f32_tmp = 4 * rows * d * 4                    # f32 values around projections/output
        scores = 3 * s * s * 4                        # scores / e / probs, one live head
        if fixed + io_bytes + scratch + f32_tmp + scores <= budget_bytes:
            best = cand
    return best


def multi_head_attention(q, k, v, params, *, num_heads: int, block_b=None,
                         compute_dtype=jnp.bfloat16, approx_softmax_recip=True):
    """q, k, v: (N, S, D). params: weights (D, D) stored as (in, out), biases (1, D).

    compute_dtype: MXU operand dtype (accumulation is always f32). bfloat16 by
    default for MXU throughput; use jnp.float32 for a tighter-accuracy path.
    """
    N, S, D = q.shape
    assert D % num_heads == 0
    d_k = D // num_heads
    op_dtype = jnp.dtype(compute_dtype)

    # Weights in the compute dtype (halves weight DMA/VMEM for f32 params);
    # biases stay f32 — they are added to f32 accumulators in the kernel.
    wq = params["wq"].astype(op_dtype)
    wk = params["wk"].astype(op_dtype)
    wv = params["wv"].astype(op_dtype)
    wo = params["wo"].astype(op_dtype)
    bq = params["bq"].astype(jnp.float32)
    bk = params["bk"].astype(jnp.float32)
    bv = params["bv"].astype(jnp.float32)
    bo = params["bo"].astype(jnp.float32)

    phys_vmem = _physical_vmem_bytes()
    vmem_limit = int(phys_vmem * 0.85)   # ~108 MiB on 128 MiB chips, ~54 MiB on v7x
    budget = int(vmem_limit * 0.85)      # headroom for compiler-internal scratch

    if block_b is None:
        block_b = _pick_block_b(N, S, D,
                                io_itemsize=jnp.dtype(q.dtype).itemsize,
                                w_itemsize=op_dtype.itemsize,
                                op_itemsize=op_dtype.itemsize,
                                num_cores=_num_tensorcores(),
                                budget_bytes=budget)
    assert N % block_b == 0
    rows = block_b * S

    kernel = functools.partial(_mha_kernel, num_heads=num_heads, d_k=d_k,
                               block_b=block_b, seq_len=S,
                               approx_recip=approx_softmax_recip)

    seq_spec = pl.BlockSpec((block_b, S, D), lambda b: (b, 0, 0))
    w_spec = pl.BlockSpec((D, D), lambda b: (0, 0))
    b_spec = pl.BlockSpec((1, D), lambda b: (0, 0))

    return pl.pallas_call(
        kernel,
        out_shape=jax.ShapeDtypeStruct((N, S, D), q.dtype),
        grid_spec=pltpu.PrefetchScalarGridSpec(
            num_scalar_prefetch=0,
            grid=(N // block_b,),
            in_specs=[seq_spec, seq_spec, seq_spec,
                      w_spec, b_spec, w_spec, b_spec,
                      w_spec, b_spec, w_spec, b_spec],
            out_specs=seq_spec,
            scratch_shapes=[pltpu.VMEM((rows, D), op_dtype),   # projected q (scaled)
                            pltpu.VMEM((rows, D), op_dtype),   # projected k
                            pltpu.VMEM((rows, D), op_dtype),   # projected v
                            pltpu.VMEM((rows, D), op_dtype)],  # concatenated head outputs
        ),
        compiler_params=pltpu.CompilerParams(
            dimension_semantics=("parallel",),
            vmem_limit_bytes=vmem_limit),
    )(q, k, v, wq, bq, wk, bk, wv, bv, wo, bo)


def _reference(q, k, v, params, *, num_heads: int):
    """Pure-JAX f32 reference mirroring the PyTorch forward (eval mode, mask=None)."""
    N, S, D = q.shape
    d_k = D // num_heads

    def lin(x, w, b):
        return x @ w + b  # w already (in, out)

    qp = lin(q, params["wq"], params["bq"][0])
    kp = lin(k, params["wk"], params["bk"][0])
    vp = lin(v, params["wv"], params["bv"][0])

    def split(x):
        return x.reshape(N, S, num_heads, d_k).transpose(0, 2, 1, 3)  # (N, H, S, d_k)

    qh, kh, vh = split(qp), split(kp), split(vp)
    scores = jnp.einsum("nhqd,nhkd->nhqk", qh, kh) / jnp.sqrt(jnp.float32(d_k))
    probs = jax.nn.softmax(scores, axis=-1)
    out = jnp.einsum("nhqk,nhkd->nhqd", probs, vh)
    out = out.transpose(0, 2, 1, 3).reshape(N, S, D)
    return lin(out, params["wo"], params["bo"][0])


def _init_params(key, d_model):
    """Deterministic init matching nn.Linear shapes (stored pre-transposed as (in, out))."""
    ks = jax.random.split(key, 8)
    bound = 1.0 / math.sqrt(d_model)

    def w(k):
        return jax.random.uniform(k, (d_model, d_model), jnp.float32, -bound, bound)

    def b(k):
        return jax.random.uniform(k, (1, d_model), jnp.float32, -bound, bound)

    return {
        "wq": w(ks[0]), "bq": b(ks[1]),
        "wk": w(ks[2]), "bk": b(ks[3]),
        "wv": w(ks[4]), "bv": b(ks[5]),
        "wo": w(ks[6]), "bo": b(ks[7]),
    }


def _make_inputs(key, N, S, D):
    kq, kk, kv, kp = jax.random.split(key, 4)
    q = jax.random.normal(kq, (N, S, D), jnp.float32)
    k = jax.random.normal(kk, (N, S, D), jnp.float32)
    v = jax.random.normal(kv, (N, S, D), jnp.float32)
    params = _init_params(kp, D)
    return q, k, v, params


if __name__ == "__main__":
    key = jax.random.PRNGKey(0)
    k_small, k_big = jax.random.split(key, 2)

    # --- Small demo shape (module-sized) ---------------------------------
    N, S, D, H = 2, 8, 32, 4
    q, k, v, params = _make_inputs(k_small, N, S, D)
    ref = _reference(q, k, v, params, num_heads=H)

    # f32 MXU operands: tight tolerance (approx reciprocal only deviation).
    out_f32 = jax.block_until_ready(
        multi_head_attention(q, k, v, params, num_heads=H,
                             compute_dtype=jnp.float32))
    assert out_f32.shape == (N, S, D)
    assert jnp.allclose(out_f32, ref, atol=2e-3, rtol=2e-3), "f32 small-shape mismatch"

    # default bf16 MXU operands (f32 accumulation): loose tolerance.
    out_bf = jax.block_until_ready(
        multi_head_attention(q, k, v, params, num_heads=H))
    assert jnp.allclose(out_bf, ref, atol=5e-2, rtol=5e-2), "bf16-compute small mismatch"

    # --- Lane-dense shape (D multiple of 128, d_k = 64) ------------------
    N2, S2, D2, H2 = 2, 128, 256, 4
    q2, k2, v2, params2 = _make_inputs(k_big, N2, S2, D2)
    ref2 = _reference(q2, k2, v2, params2, num_heads=H2)

    out2_f32 = jax.block_until_ready(
        multi_head_attention(q2, k2, v2, params2, num_heads=H2,
                             compute_dtype=jnp.float32))
    assert jnp.allclose(out2_f32, ref2, atol=2e-3, rtol=2e-3), "f32 lane-dense mismatch"

    out2_bf = jax.block_until_ready(
        multi_head_attention(q2, k2, v2, params2, num_heads=H2))
    assert jnp.allclose(out2_bf, ref2, atol=5e-2, rtol=5e-2), "bf16 lane-dense mismatch"

    # --- bf16 input path (bf16 operands, f32 accumulation in-kernel) -----
    qb, kb, vb = (x.astype(jnp.bfloat16) for x in (q, k, v))
    params_b = {kk_: vv.astype(jnp.bfloat16) for kk_, vv in params.items()}
    out_b = jax.block_until_ready(
        multi_head_attention(qb, kb, vb, params_b, num_heads=H))
    ref_b = _reference(qb.astype(jnp.float32), kb.astype(jnp.float32),
                       vb.astype(jnp.float32),
                       {kk_: vv.astype(jnp.float32) for kk_, vv in params_b.items()},
                       num_heads=H)
    assert jnp.allclose(out_b.astype(jnp.float32), ref_b, atol=5e-2, rtol=5e-2), \
        "bf16 input path mismatch"

    print("KERNEL_OK")
</pallas_src>

<mosaic_0001>
module attributes {stable_mosaic.version = 11 : i64} {
  func.func @_mha_kernel(%arg0: i32, %arg1: memref<2x8x32xf32, #tpu.memory_space<vmem>>, %arg2: memref<2x8x32xf32, #tpu.memory_space<vmem>>, %arg3: memref<2x8x32xf32, #tpu.memory_space<vmem>>, %arg4: memref<32x32xf32, #tpu.memory_space<vmem>>, %arg5: memref<1x32xf32, #tpu.memory_space<vmem>>, %arg6: memref<32x32xf32, #tpu.memory_space<vmem>>, %arg7: memref<1x32xf32, #tpu.memory_space<vmem>>, %arg8: memref<32x32xf32, #tpu.memory_space<vmem>>, %arg9: memref<1x32xf32, #tpu.memory_space<vmem>>, %arg10: memref<32x32xf32, #tpu.memory_space<vmem>>, %arg11: memref<1x32xf32, #tpu.memory_space<vmem>>, %arg12: memref<2x8x32xf32, #tpu.memory_space<vmem>>, %arg13: memref<16x32xf32, #tpu.memory_space<vmem>>, %arg14: memref<16x32xf32, #tpu.memory_space<vmem>>, %arg15: memref<16x32xf32, #tpu.memory_space<vmem>>, %arg16: memref<16x32xf32, #tpu.memory_space<vmem>>) attributes {dimension_semantics = [#tpu.dimension_semantics<parallel>], iteration_bounds = array<i64: 1>, scalar_prefetch = 0 : i64, scratch_operands = 4 : i64, tpu.core_type = #tpu.core_type<tc>, window_params = [{transform_indices = @transform_0, window_bounds = array<i64: 2, 8, 32>}, {transform_indices = @transform_1, window_bounds = array<i64: 2, 8, 32>}, {transform_indices = @transform_2, window_bounds = array<i64: 2, 8, 32>}, {pipeline_mode = #tpu.pipeline_mode<synchronous>, transform_indices = @transform_3, window_bounds = array<i64: 32, 32>}, {pipeline_mode = #tpu.pipeline_mode<synchronous>, transform_indices = @transform_4, window_bounds = array<i64: 1, 32>}, {pipeline_mode = #tpu.pipeline_mode<synchronous>, transform_indices = @transform_5, window_bounds = array<i64: 32, 32>}, {pipeline_mode = #tpu.pipeline_mode<synchronous>, transform_indices = @transform_6, window_bounds = array<i64: 1, 32>}, {pipeline_mode = #tpu.pipeline_mode<synchronous>, transform_indices = @transform_7, window_bounds = array<i64: 32, 32>}, {pipeline_mode = #tpu.pipeline_mode<synchronous>, transform_indices = @transform_8, window_bounds = array<i64: 1, 32>}, {pipeline_mode = #tpu.pipeline_mode<synchronous>, transform_indices = @transform_9, window_bounds = array<i64: 32, 32>}, {pipeline_mode = #tpu.pipeline_mode<synchronous>, transform_indices = @transform_10, window_bounds = array<i64: 1, 32>}, {transform_indices = @transform_11, window_bounds = array<i64: 2, 8, 32>}]} {
    %c0 = arith.constant 0 : index
    %c0_0 = arith.constant 0 : index
    %c0_1 = arith.constant 0 : index
    %0 = vector.load %arg1[%c0, %c0_0, %c0_1] : memref<2x8x32xf32, #tpu.memory_space<vmem>>, vector<2x8x32xf32>
    %1 = vector.shape_cast %0 : vector<2x8x32xf32> to vector<16x32xf32>
    %c0_2 = arith.constant 0 : index
    %c0_3 = arith.constant 0 : index
    %c0_4 = arith.constant 0 : index
    %2 = vector.load %arg2[%c0_2, %c0_3, %c0_4] : memref<2x8x32xf32, #tpu.memory_space<vmem>>, vector<2x8x32xf32>
    %3 = vector.shape_cast %2 : vector<2x8x32xf32> to vector<16x32xf32>
    %c0_5 = arith.constant 0 : index
    %c0_6 = arith.constant 0 : index
    %c0_7 = arith.constant 0 : index
    %4 = vector.load %arg3[%c0_5, %c0_6, %c0_7] : memref<2x8x32xf32, #tpu.memory_space<vmem>>, vector<2x8x32xf32>
    %5 = vector.shape_cast %4 : vector<2x8x32xf32> to vector<16x32xf32>
    %c0_8 = arith.constant 0 : index
    %c0_9 = arith.constant 0 : index
    %6 = vector.load %arg5[%c0_8, %c0_9] : memref<1x32xf32, #tpu.memory_space<vmem>>, vector<1x32xf32>
    %c0_10 = arith.constant 0 : index
    %c0_11 = arith.constant 0 : index
    %7 = vector.load %arg7[%c0_10, %c0_11] : memref<1x32xf32, #tpu.memory_space<vmem>>, vector<1x32xf32>
    %c0_12 = arith.constant 0 : index
    %c0_13 = arith.constant 0 : index
    %8 = vector.load %arg9[%c0_12, %c0_13] : memref<1x32xf32, #tpu.memory_space<vmem>>, vector<1x32xf32>
    %c0_14 = arith.constant 0 : index
    %c0_15 = arith.constant 0 : index
    %9 = vector.load %arg11[%c0_14, %c0_15] : memref<1x32xf32, #tpu.memory_space<vmem>>, vector<1x32xf32>
    %c0_16 = arith.constant 0 : index
    %c0_17 = arith.constant 0 : index
    %10 = vector.load %arg4[%c0_16, %c0_17] : memref<32x32xf32, #tpu.memory_space<vmem>>, vector<32x32xf32>
    %cst = arith.constant dense<0.000000e+00> : vector<16x32xf32>
    %11 = tpu.matmul %1, %10, %cst {dimension_numbers = #tpu.dot_dimension_numbers<[1], [0], [0], [1], [0, 0, 1, 1], [], []>} : vector<16x32xf32>, vector<32x32xf32>, vector<16x32xf32> -> vector<16x32xf32>
    %12 = vector.broadcast %6 : vector<1x32xf32> to vector<16x32xf32>
    %13 = arith.addf %11, %12 : vector<16x32xf32>
    %cst_18 = arith.constant 0.353553385 : f32
    %14 = vector.broadcast %cst_18 : f32 to vector<16x32xf32>
    %15 = arith.mulf %13, %14 : vector<16x32xf32>
    %c0_19 = arith.constant 0 : index
    %c0_20 = arith.constant 0 : index
    %16 = vector.load %arg13[%c0_19, %c0_20] : memref<16x32xf32, #tpu.memory_space<vmem>>, vector<16x32xf32>
    tpu.vector_store %arg13[%c0_19, %c0_20], %15 {strides = array<i32>} : memref<16x32xf32, #tpu.memory_space<vmem>>, vector<16x32xf32>,
    %c0_21 = arith.constant 0 : index
    %c0_22 = arith.constant 0 : index
    %17 = vector.load %arg6[%c0_21, %c0_22] : memref<32x32xf32, #tpu.memory_space<vmem>>, vector<32x32xf32>
    %cst_23 = arith.constant dense<0.000000e+00> : vector<16x32xf32>
    %18 = tpu.matmul %3, %17, %cst_23 {dimension_numbers = #tpu.dot_dimension_numbers<[1], [0], [0], [1], [0, 0, 1, 1], [], []>} : vector<16x32xf32>, vector<32x32xf32>, vector<16x32xf32> -> vector<16x32xf32>
    %19 = vector.broadcast %7 : vector<1x32xf32> to vector<16x32xf32>
    %20 = arith.addf %18, %19 : vector<16x32xf32>
    %c0_24 = arith.constant 0 : index
    %c0_25 = arith.constant 0 : index
    %21 = vector.load %arg14[%c0_24, %c0_25] : memref<16x32xf32, #tpu.memory_space<vmem>>, vector<16x32xf32>
    tpu.vector_store %arg14[%c0_24, %c0_25], %20 {strides = array<i32>} : memref<16x32xf32, #tpu.memory_space<vmem>>, vector<16x32xf32>,
    %c0_26 = arith.constant 0 : index
    %c0_27 = arith.constant 0 : index
    %22 = vector.load %arg8[%c0_26, %c0_27] : memref<32x32xf32, #tpu.memory_space<vmem>>, vector<32x32xf32>
    %cst_28 = arith.constant dense<0.000000e+00> : vector<16x32xf32>
    %23 = tpu.matmul %5, %22, %cst_28 {dimension_numbers = #tpu.dot_dimension_numbers<[1], [0], [0], [1], [0, 0, 1, 1], [], []>} : vector<16x32xf32>, vector<32x32xf32>, vector<16x32xf32> -> vector<16x32xf32>
    %24 = vector.broadcast %8 : vector<1x32xf32> to vector<16x32xf32>
    %25 = arith.addf %23, %24 : vector<16x32xf32>
    %c0_29 = arith.constant 0 : index
    %c0_30 = arith.constant 0 : index
    %26 = vector.load %arg15[%c0_29, %c0_30] : memref<16x32xf32, #tpu.memory_space<vmem>>, vector<16x32xf32>
    tpu.vector_store %arg15[%c0_29, %c0_30], %25 {strides = array<i32>} : memref<16x32xf32, #tpu.memory_space<vmem>>, vector<16x32xf32>,
    %c0_i32 = arith.constant 0 : i32
    %c2_i32 = arith.constant 2 : i32
    %27 = arith.addi %c0_i32, %c2_i32 : i32
    %c1_i32 = arith.constant 1 : i32
    scf.for %arg17 = %c0_i32 to %27 step %c1_i32  : i32 {
      %c8_i32 = arith.constant 8 : i32
      %35 = arith.muli %arg17, %c8_i32 : i32
      %36 = tpu.assume_multiple %35, 8 : i32
      %37 = arith.index_cast %36 : i32 to index
      %c0_40 = arith.constant 0 : index
      %38 = vector.load %arg13[%37, %c0_40] : memref<16x32xf32, #tpu.memory_space<vmem>>, vector<8x8xf32>
      %39 = arith.index_cast %36 : i32 to index
      %c0_41 = arith.constant 0 : index
      %40 = vector.load %arg14[%39, %c0_41] : memref<16x32xf32, #tpu.memory_space<vmem>>, vector<8x8xf32>
      %41 = arith.index_cast %36 : i32 to index
      %c0_42 = arith.constant 0 : index
      %42 = vector.load %arg15[%41, %c0_42] : memref<16x32xf32, #tpu.memory_space<vmem>>, vector<8x8xf32>
      %cst_43 = arith.constant dense<0.000000e+00> : vector<8x8xf32>
      %43 = tpu.matmul %38, %40, %cst_43 {dimension_numbers = #tpu.dot_dimension_numbers<[1], [1], [0], [0], [0, 0, 1, 0], [], []>} : vector<8x8xf32>, vector<8x8xf32>, vector<8x8xf32> -> vector<8x8xf32>
      %cst_44 = arith.constant dense<0xFF800000> : vector<8xf32>
      %44 = vector.multi_reduction <maximumf>, %43, %cst_44 [1] : vector<8x8xf32> to vector<8xf32>
      %45 = vector.shape_cast %44 : vector<8xf32> to vector<8x1xf32>
      %46 = vector.broadcast %45 : vector<8x1xf32> to vector<8x8xf32>
      %47 = arith.subf %43, %46 : vector<8x8xf32>
      %48 = math.exp %47 : vector<8x8xf32>
      %cst_45 = arith.constant dense<0.000000e+00> : vector<8xf32>
      %49 = vector.multi_reduction <add>, %48, %cst_45 [1] : vector<8x8xf32> to vector<8xf32>
      %50 = vector.shape_cast %49 : vector<8xf32> to vector<8x1xf32>
      %51 = tpu.reciprocal %50 {approx = true} : vector<8x1xf32> -> vector<8x1xf32>
      %52 = vector.broadcast %51 : vector<8x1xf32> to vector<8x8xf32>
      %53 = arith.mulf %48, %52 : vector<8x8xf32>
      %cst_46 = arith.constant dense<0.000000e+00> : vector<8x8xf32>
      %54 = tpu.matmul %53, %42, %cst_46 {dimension_numbers = #tpu.dot_dimension_numbers<[1], [0], [0], [1], [0, 0, 1, 1], [], []>} : vector<8x8xf32>, vector<8x8xf32>, vector<8x8xf32> -> vector<8x8xf32>
      %55 = arith.index_cast %36 : i32 to index
      %c0_47 = arith.constant 0 : index
      %56 = vector.load %arg16[%55, %c0_47] : memref<16x32xf32, #tpu.memory_space<vmem>>, vector<8x8xf32>
      tpu.vector_store %arg16[%55, %c0_47], %54 {strides = array<i32>} : memref<16x32xf32, #tpu.memory_space<vmem>>, vector<8x8xf32>,
      %57 = arith.index_cast %36 : i32 to index
      %c8 = arith.constant 8 : index
      %58 = vector.load %arg13[%57, %c8] : memref<16x32xf32, #tpu.memory_space<vmem>>, vector<8x8xf32>
      %59 = arith.index_cast %36 : i32 to index
      %c8_48 = arith.constant 8 : index
      %60 = vector.load %arg14[%59, %c8_48] : memref<16x32xf32, #tpu.memory_space<vmem>>, vector<8x8xf32>
      %61 = arith.index_cast %36 : i32 to index
      %c8_49 = arith.constant 8 : index
      %62 = vector.load %arg15[%61, %c8_49] : memref<16x32xf32, #tpu.memory_space<vmem>>, vector<8x8xf32>
      %cst_50 = arith.constant dense<0.000000e+00> : vector<8x8xf32>
      %63 = tpu.matmul %58, %60, %cst_50 {dimension_numbers = #tpu.dot_dimension_numbers<[1], [1], [0], [0], [0, 0, 1, 0], [], []>} : vector<8x8xf32>, vector<8x8xf32>, vector<8x8xf32> -> vector<8x8xf32>
      %cst_51 = arith.constant dense<0xFF800000> : vector<8xf32>
      %64 = vector.multi_reduction <maximumf>, %63, %cst_51 [1] : vector<8x8xf32> to vector<8xf32>
      %65 = vector.shape_cast %64 : vector<8xf32> to vector<8x1xf32>
      %66 = vector.broadcast %65 : vector<8x1xf32> to vector<8x8xf32>
      %67 = arith.subf %63, %66 : vector<8x8xf32>
      %68 = math.exp %67 : vector<8x8xf32>
      %cst_52 = arith.constant dense<0.000000e+00> : vector<8xf32>
      %69 = vector.multi_reduction <add>, %68, %cst_52 [1] : vector<8x8xf32> to vector<8xf32>
      %70 = vector.shape_cast %69 : vector<8xf32> to vector<8x1xf32>
      %71 = tpu.reciprocal %70 {approx = true} : vector<8x1xf32> -> vector<8x1xf32>
      %72 = vector.broadcast %71 : vector<8x1xf32> to vector<8x8xf32>
      %73 = arith.mulf %68, %72 : vector<8x8xf32>
      %cst_53 = arith.constant dense<0.000000e+00> : vector<8x8xf32>
      %74 = tpu.matmul %73, %62, %cst_53 {dimension_numbers = #tpu.dot_dimension_numbers<[1], [0], [0], [1], [0, 0, 1, 1], [], []>} : vector<8x8xf32>, vector<8x8xf32>, vector<8x8xf32> -> vector<8x8xf32>
      %75 = arith.index_cast %36 : i32 to index
      %c8_54 = arith.constant 8 : index
      %76 = vector.load %arg16[%75, %c8_54] : memref<16x32xf32, #tpu.memory_space<vmem>>, vector<8x8xf32>
      tpu.vector_store %arg16[%75, %c8_54], %74 {strides = array<i32>} : memref<16x32xf32, #tpu.memory_space<vmem>>, vector<8x8xf32>,
      %77 = arith.index_cast %36 : i32 to index
      %c16 = arith.constant 16 : index
      %78 = vector.load %arg13[%77, %c16] : memref<16x32xf32, #tpu.memory_space<vmem>>, vector<8x8xf32>
      %79 = arith.index_cast %36 : i32 to index
      %c16_55 = arith.constant 16 : index
      %80 = vector.load %arg14[%79, %c16_55] : memref<16x32xf32, #tpu.memory_space<vmem>>, vector<8x8xf32>
      %81 = arith.index_cast %36 : i32 to index
      %c16_56 = arith.constant 16 : index
      %82 = vector.load %arg15[%81, %c16_56] : memref<16x32xf32, #tpu.memory_space<vmem>>, vector<8x8xf32>
      %cst_57 = arith.constant dense<0.000000e+00> : vector<8x8xf32>
      %83 = tpu.matmul %78, %80, %cst_57 {dimension_numbers = #tpu.dot_dimension_numbers<[1], [1], [0], [0], [0, 0, 1, 0], [], []>} : vector<8x8xf32>, vector<8x8xf32>, vector<8x8xf32> -> vector<8x8xf32>
      %cst_58 = arith.constant dense<0xFF800000> : vector<8xf32>
      %84 = vector.multi_reduction <maximumf>, %83, %cst_58 [1] : vector<8x8xf32> to vector<8xf32>
      %85 = vector.shape_cast %84 : vector<8xf32> to vector<8x1xf32>
      %86 = vector.broadcast %85 : vector<8x1xf32> to vector<8x8xf32>
      %87 = arith.subf %83, %86 : vector<8x8xf32>
      %88 = math.exp %87 : vector<8x8xf32>
      %cst_59 = arith.constant dense<0.000000e+00> : vector<8xf32>
      %89 = vector.multi_reduction <add>, %88, %cst_59 [1] : vector<8x8xf32> to vector<8xf32>
      %90 = vector.shape_cast %89 : vector<8xf32> to vector<8x1xf32>
      %91 = tpu.reciprocal %90 {approx = true} : vector<8x1xf32> -> vector<8x1xf32>
      %92 = vector.broadcast %91 : vector<8x1xf32> to vector<8x8xf32>
      %93 = arith.mulf %88, %92 : vector<8x8xf32>
      %cst_60 = arith.constant dense<0.000000e+00> : vector<8x8xf32>
      %94 = tpu.matmul %93, %82, %cst_60 {dimension_numbers = #tpu.dot_dimension_numbers<[1], [0], [0], [1], [0, 0, 1, 1], [], []>} : vector<8x8xf32>, vector<8x8xf32>, vector<8x8xf32> -> vector<8x8xf32>
      %95 = arith.index_cast %36 : i32 to index
      %c16_61 = arith.constant 16 : index
      %96 = vector.load %arg16[%95, %c16_61] : memref<16x32xf32, #tpu.memory_space<vmem>>, vector<8x8xf32>
      tpu.vector_store %arg16[%95, %c16_61], %94 {strides = array<i32>} : memref<16x32xf32, #tpu.memory_space<vmem>>, vector<8x8xf32>,
      %97 = arith.index_cast %36 : i32 to index
      %c24 = arith.constant 24 : index
      %98 = vector.load %arg13[%97, %c24] : memref<16x32xf32, #tpu.memory_space<vmem>>, vector<8x8xf32>
      %99 = arith.index_cast %36 : i32 to index
      %c24_62 = arith.constant 24 : index
      %100 = vector.load %arg14[%99, %c24_62] : memref<16x32xf32, #tpu.memory_space<vmem>>, vector<8x8xf32>
      %101 = arith.index_cast %36 : i32 to index
      %c24_63 = arith.constant 24 : index
      %102 = vector.load %arg15[%101, %c24_63] : memref<16x32xf32, #tpu.memory_space<vmem>>, vector<8x8xf32>
      %cst_64 = arith.constant dense<0.000000e+00> : vector<8x8xf32>
      %103 = tpu.matmul %98, %100, %cst_64 {dimension_numbers = #tpu.dot_dimension_numbers<[1], [1], [0], [0], [0, 0, 1, 0], [], []>} : vector<8x8xf32>, vector<8x8xf32>, vector<8x8xf32> -> vector<8x8xf32>
      %cst_65 = arith.constant dense<0xFF800000> : vector<8xf32>
      %104 = vector.multi_reduction <maximumf>, %103, %cst_65 [1] : vector<8x8xf32> to vector<8xf32>
      %105 = vector.shape_cast %104 : vector<8xf32> to vector<8x1xf32>
      %106 = vector.broadcast %105 : vector<8x1xf32> to vector<8x8xf32>
      %107 = arith.subf %103, %106 : vector<8x8xf32>
      %108 = math.exp %107 : vector<8x8xf32>
      %cst_66 = arith.constant dense<0.000000e+00> : vector<8xf32>
      %109 = vector.multi_reduction <add>, %108, %cst_66 [1] : vector<8x8xf32> to vector<8xf32>
      %110 = vector.shape_cast %109 : vector<8xf32> to vector<8x1xf32>
      %111 = tpu.reciprocal %110 {approx = true} : vector<8x1xf32> -> vector<8x1xf32>
      %112 = vector.broadcast %111 : vector<8x1xf32> to vector<8x8xf32>
      %113 = arith.mulf %108, %112 : vector<8x8xf32>
      %cst_67 = arith.constant dense<0.000000e+00> : vector<8x8xf32>
      %114 = tpu.matmul %113, %102, %cst_67 {dimension_numbers = #tpu.dot_dimension_numbers<[1], [0], [0], [1], [0, 0, 1, 1], [], []>} : vector<8x8xf32>, vector<8x8xf32>, vector<8x8xf32> -> vector<8x8xf32>
      %115 = arith.index_cast %36 : i32 to index
      %c24_68 = arith.constant 24 : index
      %116 = vector.load %arg16[%115, %c24_68] : memref<16x32xf32, #tpu.memory_space<vmem>>, vector<8x8xf32>
      tpu.vector_store %arg16[%115, %c24_68], %114 {strides = array<i32>} : memref<16x32xf32, #tpu.memory_space<vmem>>, vector<8x8xf32>,
    }
    %c2_i32_31 = arith.constant 2 : i32
    %c0_32 = arith.constant 0 : index
    %c0_33 = arith.constant 0 : index
    %28 = vector.load %arg16[%c0_32, %c0_33] : memref<16x32xf32, #tpu.memory_space<vmem>>, vector<16x32xf32>
    %c0_34 = arith.constant 0 : index
    %c0_35 = arith.constant 0 : index
    %29 = vector.load %arg10[%c0_34, %c0_35] : memref<32x32xf32, #tpu.memory_space<vmem>>, vector<32x32xf32>
    %cst_36 = arith.constant dense<0.000000e+00> : vector<16x32xf32>
    %30 = tpu.matmul %28, %29, %cst_36 {dimension_numbers = #tpu.dot_dimension_numbers<[1], [0], [0], [1], [0, 0, 1, 1], [], []>} : vector<16x32xf32>, vector<32x32xf32>, vector<16x32xf32> -> vector<16x32xf32>
    %31 = vector.broadcast %9 : vector<1x32xf32> to vector<16x32xf32>
    %32 = arith.addf %30, %31 : vector<16x32xf32>
    %33 = vector.shape_cast %32 : vector<16x32xf32> to vector<2x8x32xf32>
    %c0_37 = arith.constant 0 : index
    %c0_38 = arith.constant 0 : index
    %c0_39 = arith.constant 0 : index
    %34 = vector.load %arg12[%c0_37, %c0_38, %c0_39] : memref<2x8x32xf32, #tpu.memory_space<vmem>>, vector<2x8x32xf32>
    tpu.vector_store %arg12[%c0_37, %c0_38, %c0_39], %33 {strides = array<i32>} : memref<2x8x32xf32, #tpu.memory_space<vmem>>, vector<2x8x32xf32>,
    return
  }
  func.func @transform_0(%arg0: i32) -> (i32, i32, i32) {
    %c0_i32 = arith.constant 0 : i32
    %c0_i32_0 = arith.constant 0 : i32
    %c0_i32_1 = arith.constant 0 : i32
    return %arg0, %c0_i32, %c0_i32_0 : i32, i32, i32
  }
  func.func @transform_1(%arg0: i32) -> (i32, i32, i32) {
    %c0_i32 = arith.constant 0 : i32
    %c0_i32_0 = arith.constant 0 : i32
    %c0_i32_1 = arith.constant 0 : i32
    return %arg0, %c0_i32, %c0_i32_0 : i32, i32, i32
  }
  func.func @transform_2(%arg0: i32) -> (i32, i32, i32) {
    %c0_i32 = arith.constant 0 : i32
    %c0_i32_0 = arith.constant 0 : i32
    %c0_i32_1 = arith.constant 0 : i32
    return %arg0, %c0_i32, %c0_i32_0 : i32, i32, i32
  }
  func.func @transform_3(%arg0: i32) -> (i32, i32) {
    %c0_i32 = arith.constant 0 : i32
    %c0_i32_0 = arith.constant 0 : i32
    %c0_i32_1 = arith.constant 0 : i32
    return %c0_i32, %c0_i32_0 : i32, i32
  }
  func.func @transform_4(%arg0: i32) -> (i32, i32) {
    %c0_i32 = arith.constant 0 : i32
    %c0_i32_0 = arith.constant 0 : i32
    %c0_i32_1 = arith.constant 0 : i32
    return %c0_i32, %c0_i32_0 : i32, i32
  }
  func.func @transform_5(%arg0: i32) -> (i32, i32) {
    %c0_i32 = arith.constant 0 : i32
    %c0_i32_0 = arith.constant 0 : i32
    %c0_i32_1 = arith.constant 0 : i32
    return %c0_i32, %c0_i32_0 : i32, i32
  }
  func.func @transform_6(%arg0: i32) -> (i32, i32) {
    %c0_i32 = arith.constant 0 : i32
    %c0_i32_0 = arith.constant 0 : i32
    %c0_i32_1 = arith.constant 0 : i32
    return %c0_i32, %c0_i32_0 : i32, i32
  }
  func.func @transform_7(%arg0: i32) -> (i32, i32) {
    %c0_i32 = arith.constant 0 : i32
    %c0_i32_0 = arith.constant 0 : i32
    %c0_i32_1 = arith.constant 0 : i32
    return %c0_i32, %c0_i32_0 : i32, i32
  }
  func.func @transform_8(%arg0: i32) -> (i32, i32) {
    %c0_i32 = arith.constant 0 : i32
    %c0_i32_0 = arith.constant 0 : i32
    %c0_i32_1 = arith.constant 0 : i32
    return %c0_i32, %c0_i32_0 : i32, i32
  }
  func.func @transform_9(%arg0: i32) -> (i32, i32) {
    %c0_i32 = arith.constant 0 : i32
    %c0_i32_0 = arith.constant 0 : i32
    %c0_i32_1 = arith.constant 0 : i32
    return %c0_i32, %c0_i32_0 : i32, i32
  }
  func.func @transform_10(%arg0: i32) -> (i32, i32) {
    %c0_i32 = arith.constant 0 : i32
    %c0_i32_0 = arith.constant 0 : i32
    %c0_i32_1 = arith.constant 0 : i32
    return %c0_i32, %c0_i32_0 : i32, i32
  }
  func.func @transform_11(%arg0: i32) -> (i32, i32, i32) {
    %c0_i32 = arith.constant 0 : i32
    %c0_i32_0 = arith.constant 0 : i32
    %c0_i32_1 = arith.constant 0 : i32
    return %arg0, %c0_i32, %c0_i32_0 : i32, i32, i32
  }
}

</mosaic_0001>

<llo_original>
// kernel: tpu_custom_call.1
$region0: #{tpu_custom_call.1}
  #allocation0 [shape = 'u32[]', space=smem, size = 0x4, offset = 0x4, fixed_abs, tag = 'smem constant byte address 0x4 - core index']
  #allocation1 [shape = 'u32[144,128]{1,0:T(1,128)}', space=vmem, size = 0x12000, scoped, tag = 'internal scratch']
  #allocation2 [shape = 'f32[16,32]{1,0:T(8,128)}', space=vmem, size = 0x2000, scoped, tag = 'scratch operand']
  #allocation3 [shape = 'f32[16,32]{1,0:T(8,128)}', space=vmem, size = 0x2000, scoped, tag = 'scratch operand']
  #allocation4 [shape = 'f32[16,32]{1,0:T(8,128)}', space=vmem, size = 0x2000, scoped, tag = 'scratch operand']
  #allocation5 [shape = 'f32[16,32]{1,0:T(8,128)}', space=vmem, size = 0x2000, scoped, tag = 'scratch operand']
  %s0 = inlined_call_operand.hbm [shape: f32[2,8,32], index: 0, kind: input, shape index: {}]
  %s1 = inlined_call_operand.hbm [shape: f32[2,8,32], index: 1, kind: input, shape index: {}]
  %s2 = inlined_call_operand.hbm [shape: f32[2,8,32], index: 2, kind: input, shape index: {}]
  %s3 = inlined_call_operand.hbm [shape: f32[32,32], index: 3, kind: input, shape index: {}]
  %s4 = inlined_call_operand.vmem [shape: f32[1,32], index: 4, kind: input, shape index: {}]
  %s5 = inlined_call_operand.hbm [shape: f32[32,32], index: 5, kind: input, shape index: {}]
  %s6 = inlined_call_operand.vmem [shape: f32[1,32], index: 6, kind: input, shape index: {}]
  %s7 = inlined_call_operand.hbm [shape: f32[32,32], index: 7, kind: input, shape index: {}]
  %s8 = inlined_call_operand.hbm [shape: f32[1,32], index: 8, kind: input, shape index: {}]
  %s9 = inlined_call_operand.vmem [shape: f32[32,32], index: 9, kind: input, shape index: {}]
  %s10 = inlined_call_operand.vmem [shape: f32[1,32], index: 10, kind: input, shape index: {}]
  %s11 = inlined_call_operand.hbm [shape: f32[2,8,32], index: 11, kind: output, shape index: {}]
  %s12 = sld [smem:[#allocation0]]
  $region89: #{tpu_custom_call.1} parent=0
    _
  %s14 = ssub.s32 1, %s12
  %s15 = scalar_select 0, %s14, %s12
  $region1: #{tpu_custom_call.1} parent=0
    #allocation6 [shape = 'u8[8192]{0}', space=vmem, size = 0x2000, scoped, tag = 'input window, operand 0, single buffered']
    #allocation7 [shape = 's32[1]{0}', space=sflag, size = 0x4, scoped, tag = 'scoped memory for tpu_custom_call.1']
    #allocation8 [shape = 's32[1]{0}', space=sflag, size = 0x4, scoped, tag = 'scoped memory for tpu_custom_call.1']
    #allocation9 [shape = 'u8[8192]{0}', space=vmem, size = 0x2000, scoped, tag = 'input window, operand 1, single buffered']
    #allocation10 [shape = 's32[1]{0}', space=sflag, size = 0x4, scoped, tag = 'scoped memory for tpu_custom_call.1']
    #allocation11 [shape = 'u8[8192]{0}', space=vmem, size = 0x2000, scoped, tag = 'input window, operand 2, single buffered']
    #allocation12 [shape = 'u8[16384]{0}', space=vmem, size = 0x4000, scoped, tag = 'input window, operand 3, single buffered']
    #allocation13 [shape = 's32[1]{0}', space=sflag, size = 0x4, scoped, tag = 'scoped memory for tpu_custom_call.1']
    #allocation14 [shape = 'u8[16384]{0}', space=vmem, size = 0x4000, scoped, tag = 'input window, operand 5, single buffered']
    #allocation15 [shape = 'u8[16384]{0}', space=vmem, size = 0x4000, scoped, tag = 'input window, operand 7, single buffered']
    #allocation16 [shape = 's32[1]{0}', space=sflag, size = 0x4, scoped, tag = 'scoped memory for tpu_custom_call.1']
    #allocation17 [shape = 'u8[512]{0}', space=vmem, size = 0x400, scoped, tag = 'input window, operand 8, single buffered']
    #allocation18 [shape = 'u8[8192]{0}', space=vmem, size = 0x2000, scoped, tag = 'output window, operand 0, single buffered']
    %16 = vsyncpa [#allocation7], 0
    %17 = vsyncpa [#allocation10], 0
    %18 = vsyncpa [#allocation13], 0
    %19 = vsyncpa [#allocation16], 0
    %20 = vsyncpa [#allocation8], 0
    // Predicated region
    $region2: #{tpu_custom_call.1} parent=1 // pred_check
      _
    $region3: #{tpu_custom_call.1} parent=1 // pred_check_branch
      %22 = sbr.rel (0) target = $region5
    $region4: #{tpu_custom_call.1} parent=1 // pred_region
      %s24 = ssub.s32 256, 256
      %25 = vsyncadd [#allocation7], %s24
      %s26 = sshll.u32 [#allocation6], 4
      %s27 = int_to_ptr.vmem [resolvable:$true] %s26
      %32 = dma.hbm_to_vmem [thread:$0]  %s0, 256, %s27, [#allocation7], 128, 128, 8
    $region5: #{tpu_custom_call.1} parent=1 // pred_fallthru
      _
    // Predicated region
    $region6: #{tpu_custom_call.1} parent=1 // pred_check
      _
    $region7: #{tpu_custom_call.1} parent=1 // pred_check_branch
      %34 = sbr.rel (0) target = $region9
    $region8: #{tpu_custom_call.1} parent=1 // pred_region
      %s36 = ssub.s32 256, 256
      %37 = vsyncadd [#allocation10], %s36
      %s38 = sshll.u32 [#allocation9], 4
      %s39 = int_to_ptr.vmem [resolvable:$true] %s38
      %44 = dma.hbm_to_vmem [thread:$0]  %s1, 256, %s39, [#allocation10], 128, 128, 8
    $region9: #{tpu_custom_call.1} parent=1 // pred_fallthru
      _
    // Predicated region
    $region10: #{tpu_custom_call.1} parent=1 // pred_check
      _
    $region11: #{tpu_custom_call.1} parent=1 // pred_check_branch
      %46 = sbr.rel (0) target = $region13
    $region12: #{tpu_custom_call.1} parent=1 // pred_region
      %s48 = ssub.s32 256, 256
      %49 = vsyncadd [#allocation10], %s48
      %s50 = sshll.u32 [#allocation11], 4
      %s51 = int_to_ptr.vmem [resolvable:$true] %s50
      %56 = dma.hbm_to_vmem [thread:$0]  %s2, 256, %s51, [#allocation10], 128, 128, 8
    $region13: #{tpu_custom_call.1} parent=1 // pred_fallthru
      _
    // Predicated region
    $region14: #{tpu_custom_call.1} parent=1 // pred_check
      _
    $region15: #{tpu_custom_call.1} parent=1 // pred_check_branch
      %58 = sbr.rel (0) target = $region17
    $region16: #{tpu_custom_call.1} parent=1 // pred_region
      %s60 = ssub.s32 512, 512
      %61 = vsyncadd [#allocation13], %s60
      %s62 = sshll.u32 [#allocation12], 4
      %s63 = int_to_ptr.vmem [resolvable:$true] %s62
      %68 = dma.hbm_to_vmem [thread:$0]  %s3, 512, %s63, [#allocation13], 128, 128, 8
    $region17: #{tpu_custom_call.1} parent=1 // pred_fallthru
      _
    // Predicated region
    $region18: #{tpu_custom_call.1} parent=1 // pred_check
      _
    $region19: #{tpu_custom_call.1} parent=1 // pred_check_branch
      %70 = sbr.rel (0) target = $region21
    $region20: #{tpu_custom_call.1} parent=1 // pred_region
      _
    $region21: #{tpu_custom_call.1} parent=1 // pred_fallthru
      _
    // Predicated region
    $region22: #{tpu_custom_call.1} parent=1 // pred_check
      _
    $region23: #{tpu_custom_call.1} parent=1 // pred_check_branch
      %72 = sbr.rel (0) target = $region25
    $region24: #{tpu_custom_call.1} parent=1 // pred_region
      %s74 = ssub.s32 512, 512
      %75 = vsyncadd [#allocation13], %s74
      %s76 = sshll.u32 [#allocation14], 4
      %s77 = int_to_ptr.vmem [resolvable:$true] %s76
      %82 = dma.hbm_to_vmem [thread:$0]  %s5, 512, %s77, [#allocation13], 128, 128, 8
    $region25: #{tpu_custom_call.1} parent=1 // pred_fallthru
      _
    // Predicated region
    $region26: #{tpu_custom_call.1} parent=1 // pred_check
      _
    $region27: #{tpu_custom_call.1} parent=1 // pred_check_branch
      %84 = sbr.rel (0) target = $region29
    $region28: #{tpu_custom_call.1} parent=1 // pred_region
      _
    $region29: #{tpu_custom_call.1} parent=1 // pred_fallthru
      _
    // Predicated region
    $region30: #{tpu_custom_call.1} parent=1 // pred_check
      _
    $region31: #{tpu_custom_call.1} parent=1 // pred_check_branch
      %86 = sbr.rel (0) target = $region33
    $region32: #{tpu_custom_call.1} parent=1 // pred_region
      %s88 = ssub.s32 512, 512
      %89 = vsyncadd [#allocation16], %s88
      %s90 = sshll.u32 [#allocation15], 4
      %s91 = int_to_ptr.vmem [resolvable:$true] %s90
      %96 = dma.hbm_to_vmem [thread:$0]  %s7, 512, %s91, [#allocation16], 128, 128, 8
    $region33: #{tpu_custom_call.1} parent=1 // pred_fallthru
      _
    // Predicated region
    $region34: #{tpu_custom_call.1} parent=1 // pred_check
      _
    $region35: #{tpu_custom_call.1} parent=1 // pred_check_branch
      %98 = sbr.rel (0) target = $region37
    $region36: #{tpu_custom_call.1} parent=1 // pred_region
      %s100 = ssub.s32 16, 16
      %101 = vsyncadd [#allocation16], %s100
      %s103 = sshll.u32 [#allocation17], 4
      %s104 = int_to_ptr.vmem [resolvable:$true] %s103
      %106 = dma.hbm_to_vmem [thread:$0]  %s8, 16, %s104, [#allocation16]
    $region37: #{tpu_custom_call.1} parent=1 // pred_fallthru
      _
    // Predicated region
    $region38: #{tpu_custom_call.1} parent=1 // pred_check
      _
    $region39: #{tpu_custom_call.1} parent=1 // pred_check_branch
      %108 = sbr.rel (0) target = $region41
    $region40: #{tpu_custom_call.1} parent=1 // pred_region
      _
    $region41: #{tpu_custom_call.1} parent=1 // pred_fallthru
      _
    // Predicated region
    $region42: #{tpu_custom_call.1} parent=1 // pred_check
      _
    $region43: #{tpu_custom_call.1} parent=1 // pred_check_branch
      %110 = sbr.rel (0) target = $region45
    $region44: #{tpu_custom_call.1} parent=1 // pred_region
      _
    $region45: #{tpu_custom_call.1} parent=1 // pred_fallthru
      _
    // Predicated region
    $region46: #{tpu_custom_call.1} parent=1 // pred_check
      _
    $region47: #{tpu_custom_call.1} parent=1 // pred_check_branch
      %112 = sbr.rel (0) target = $region49
    $region48: #{tpu_custom_call.1} parent=1 // pred_region
      %113 = dma.done [#allocation7], 256
    $region49: #{tpu_custom_call.1} parent=1 // pred_fallthru
      _
    // Predicated region
    $region50: #{tpu_custom_call.1} parent=1 // pred_check
      _
    $region51: #{tpu_custom_call.1} parent=1 // pred_check_branch
      %115 = sbr.rel (0) target = $region53
    $region52: #{tpu_custom_call.1} parent=1 // pred_region
      %116 = dma.done [#allocation10], 256
    $region53: #{tpu_custom_call.1} parent=1 // pred_fallthru
      _
    // Predicated region
    $region54: #{tpu_custom_call.1} parent=1 // pred_check
      _
    $region55: #{tpu_custom_call.1} parent=1 // pred_check_branch
      %118 = sbr.rel (0) target = $region57
    $region56: #{tpu_custom_call.1} parent=1 // pred_region
      %119 = dma.done [#allocation10], 256
    $region57: #{tpu_custom_call.1} parent=1 // pred_fallthru
      _
    // Predicated region
    $region58: #{tpu_custom_call.1} parent=1 // pred_check
      _
    $region59: #{tpu_custom_call.1} parent=1 // pred_check_branch
      %121 = sbr.rel (0) target = $region61
    $region60: #{tpu_custom_call.1} parent=1 // pred_region
      %122 = dma.done [#allocation13], 512
    $region61: #{tpu_custom_call.1} parent=1 // pred_fallthru
      _
    // Predicated region
    $region62: #{tpu_custom_call.1} parent=1 // pred_check
      _
    $region63: #{tpu_custom_call.1} parent=1 // pred_check_branch
      %124 = sbr.rel (0) target = $region65
    $region64: #{tpu_custom_call.1} parent=1 // pred_region
      %125 = dma.done [#allocation13], 512
    $region65: #{tpu_custom_call.1} parent=1 // pred_fallthru
      _
    // Predicated region
    $region66: #{tpu_custom_call.1} parent=1 // pred_check
      _
    $region67: #{tpu_custom_call.1} parent=1 // pred_check_branch
      %127 = sbr.rel (0) target = $region69
    $region68: #{tpu_custom_call.1} parent=1 // pred_region
      %128 = dma.done [#allocation16], 512
    $region69: #{tpu_custom_call.1} parent=1 // pred_fallthru
      _
    // Predicated region
    $region70: #{tpu_custom_call.1} parent=1 // pred_check
      _
    $region71: #{tpu_custom_call.1} parent=1 // pred_check_branch
      %130 = sbr.rel (0) target = $region73
    $region72: #{tpu_custom_call.1} parent=1 // pred_region
      %131 = dma.done [#allocation16], 16
    $region73: #{tpu_custom_call.1} parent=1 // pred_fallthru
      _
    %v132 = vld [vmem:[#allocation6] sm:$0xff]
    %v133 = vld [vmem:[#allocation6 + $0x8] sm:$0xff]
    %v134 = vld [vmem:[#allocation9] sm:$0xff]
    %v135 = vld [vmem:[#allocation9 + $0x8] sm:$0xff]
    %v136 = vld [vmem:[#allocation11] sm:$0xff]
    %v137 = vld [vmem:[#allocation11 + $0x8] sm:$0xff]
    %v138 = vld [vmem:[%s4] sm:$0x1]
    %v139 = vld [vmem:[%s6] sm:$0x1]
    %v140 = vld [vmem:[#allocation17] sm:$0x1]
    %v141 = vld [vmem:[%s10] sm:$0x1]
    %v142 = vld [vmem:[#allocation12] sm:$0xff]
    %v143 = vld [vmem:[#allocation12 + $0x8] sm:$0xff]
    %v144 = vld [vmem:[#allocation12 + $0x10] sm:$0xff]
    %v145 = vld [vmem:[#allocation12 + $0x18] sm:$0xff]
    %v147 = vlaneseq
    %v148 = vshrl.u32 %v147, 7
    %v149 = vsub.s32 0, %v148
    %v150 = vrot.slane %v138, %v149
    %vm152 = vcmask 261120
    %v154 = vsel %vm152, %v132, 0
    %v157 = vsel %vm152, %v133, 0
    %159 = vmatprep.subr.mxu0 0.0
    %160 = vmatpush1.msra.mxu0 %v142
    %161 = vmatprep.subr.mxu0 0.0
    %162 = vmatpush1.msra.mxu0 %v143
    %163 = vmatprep.subr.mxu0 0.0
    %164 = vmatpush1.msra.mxu0 %v144
    %165 = vmatprep.subr.mxu0 0.0
    %166 = vmatpush1.msra.mxu0 %v145
    %167 = vmatprep.subr.mxu0 0.0
    %168 = vmatpush1.msra.mxu0 0.0
    %169 = vmatprep.subr.mxu0 0.0
    %170 = vmatpush1.msra.mxu0 0.0
    %171 = vmatprep.subr.mxu0 0.0
    %172 = vmatpush1.msra.mxu0 0.0
    %173 = vmatprep.subr.mxu0 0.0
    %174 = vmatpush1.msra.mxu0 0.0
    %175 = vmatprep.subr.mxu0 0.0
    %176 = vmatpush1.msra.mxu0 0.0
    %177 = vmatprep.subr.mxu0 0.0
    %178 = vmatpush1.msra.mxu0 0.0
    %179 = vmatprep.subr.mxu0 0.0
    %180 = vmatpush1.msra.mxu0 0.0
    %181 = vmatprep.subr.mxu0 0.0
    %182 = vmatpush1.msra.mxu0 0.0
    %183 = vmatprep.subr.mxu0 0.0
    %184 = vmatpush1.msra.mxu0 0.0
    %185 = vmatprep.subr.mxu0 0.0
    %186 = vmatpush1.msra.mxu0 0.0
    %187 = vmatprep.subr.mxu0 0.0
    %188 = vmatpush1.msra.mxu0 0.0
    %189 = vmatprep.subr.mxu0 0.0
    %190 = vmatpush1.msra.mxu0 0.0
    %191 = vmatprep.subr.mxu0 0.0
    %192 = vmatpush1.msra.mxu0 0.0
    %193 = vmatprep.subr.mxu0 0.0
    %194 = vmatpush1.msra.mxu0 0.0
    %195 = vmatprep.subr.mxu0 0.0
    %196 = vmatpush1.msra.mxu0 0.0
    %197 = vmatprep.subr.mxu0 0.0
    %198 = vmatpush1.msra.mxu0 0.0
    %199 = vmatprep.subr.mxu0 0.0
    %200 = vmatpush1.msra.mxu0 0.0
    %201 = vmatprep.subr.mxu0 0.0
    %202 = vmatpush1.msra.mxu0 0.0
    %203 = vmatprep.subr.mxu0 0.0
    %204 = vmatpush1.msra.mxu0 0.0
    %205 = vmatprep.subr.mxu0 0.0
    %206 = vmatpush1.msra.mxu0 0.0
    %207 = vmatprep.subr.mxu0 0.0
    %208 = vmatpush1.msra.mxu0 0.0
    %209 = vmatprep.subr.mxu0 0.0
    %210 = vmatpush1.msra.mxu0 0.0
    %211 = vmatprep.subr.mxu0 0.0
    %212 = vmatpush1.msra.mxu0 0.0
    %213 = vmatprep.subr.mxu0 0.0
    %214 = vmatpush1.msra.mxu0 0.0
    %215 = vmatprep.subr.mxu0 0.0
    %216 = vmatpush1.msra.mxu0 0.0
    %217 = vmatprep.subr.mxu0 0.0
    %218 = vmatpush1.msra.mxu0 0.0
    %219 = vmatprep.subr.mxu0 0.0
    %220 = vmatpush1.msra.mxu0 0.0
    %221 = vmatprep.subr.mxu0 0.0
    %222 = vmatpush1.msra.mxu0 0.0
    %223 = vmatprep.mubr.f32.mxu0 0.0
    %224 = vmatmul.mubr.f32.gmra.mrb[0].mxu0 %v154
    %v225 = vpop.f32.mrb[0].mxu0
    %v226 = vadd.f32 %v150, %v225
    %v227 = vpop.f32.mrb[0].mxu0
    %228 = vmatprep.mubr.f32.mxu0 0.0
    %229 = vmatmul.mubr.f32.gmra.mrb[0].mxu0 %v157
    %v230 = vpop.f32.mrb[0].mxu0
    %v231 = vadd.f32 %v150, %v230
    %v232 = vpop.f32.mrb[0].mxu0
    %233 = vdwg.mxu0
    %v234 = vmul.f32 %v226, 0.35355338
    %v235 = vmul.f32 %v231, 0.35355338
    %236 = vst.msk [vmem:[#allocation2] sm:$0xff] %vm152, %v234
    %237 = vst.msk [vmem:[#allocation2 + $0x8] sm:$0xff] %vm152, %v235
    %v238 = vld [vmem:[#allocation14] sm:$0xff]
    %v239 = vld [vmem:[#allocation14 + $0x8] sm:$0xff]
    %v240 = vld [vmem:[#allocation14 + $0x10] sm:$0xff]
    %v241 = vld [vmem:[#allocation14 + $0x18] sm:$0xff]
    %v243 = vlaneseq
    %v244 = vshrl.u32 %v243, 7
    %v245 = vsub.s32 0, %v244
    %v246 = vrot.slane %v139, %v245
    %v249 = vsel %vm152, %v134, 0
    %v252 = vsel %vm152, %v135, 0
    %254 = vmatprep.subr.mxu0 0.0
    %255 = vmatpush1.msra.mxu0 %v238
    %256 = vmatprep.subr.mxu0 0.0
    %257 = vmatpush1.msra.mxu0 %v239
    %258 = vmatprep.subr.mxu0 0.0
    %259 = vmatpush1.msra.mxu0 %v240
    %260 = vmatprep.subr.mxu0 0.0
    %261 = vmatpush1.msra.mxu0 %v241
    %262 = vmatprep.subr.mxu0 0.0
    %263 = vmatpush1.msra.mxu0 0.0
    %264 = vmatprep.subr.mxu0 0.0
    %265 = vmatpush1.msra.mxu0 0.0
    %266 = vmatprep.subr.mxu0 0.0
    %267 = vmatpush1.msra.mxu0 0.0
    %268 = vmatprep.subr.mxu0 0.0
    %269 = vmatpush1.msra.mxu0 0.0
    %270 = vmatprep.subr.mxu0 0.0
    %271 = vmatpush1.msra.mxu0 0.0
    %272 = vmatprep.subr.mxu0 0.0
    %273 = vmatpush1.msra.mxu0 0.0
    %274 = vmatprep.subr.mxu0 0.0
    %275 = vmatpush1.msra.mxu0 0.0
    %276 = vmatprep.subr.mxu0 0.0
    %277 = vmatpush1.msra.mxu0 0.0
    %278 = vmatprep.subr.mxu0 0.0
    %279 = vmatpush1.msra.mxu0 0.0
    %280 = vmatprep.subr.mxu0 0.0
    %281 = vmatpush1.msra.mxu0 0.0
    %282 = vmatprep.subr.mxu0 0.0
    %283 = vmatpush1.msra.mxu0 0.0
    %284 = vmatprep.subr.mxu0 0.0
    %285 = vmatpush1.msra.mxu0 0.0
    %286 = vmatprep.subr.mxu0 0.0
    %287 = vmatpush1.msra.mxu0 0.0
    %288 = vmatprep.subr.mxu0 0.0
    %289 = vmatpush1.msra.mxu0 0.0
    %290 = vmatprep.subr.mxu0 0.0
    %291 = vmatpush1.msra.mxu0 0.0
    %292 = vmatprep.subr.mxu0 0.0
    %293 = vmatpush1.msra.mxu0 0.0
    %294 = vmatprep.subr.mxu0 0.0
    %295 = vmatpush1.msra.mxu0 0.0
    %296 = vmatprep.subr.mxu0 0.0
    %297 = vmatpush1.msra.mxu0 0.0
    %298 = vmatprep.subr.mxu0 0.0
    %299 = vmatpush1.msra.mxu0 0.0
    %300 = vmatprep.subr.mxu0 0.0
    %301 = vmatpush1.msra.mxu0 0.0
    %302 = vmatprep.subr.mxu0 0.0
    %303 = vmatpush1.msra.mxu0 0.0
    %304 = vmatprep.subr.mxu0 0.0
    %305 = vmatpush1.msra.mxu0 0.0
    %306 = vmatprep.subr.mxu0 0.0
    %307 = vmatpush1.msra.mxu0 0.0
    %308 = vmatprep.subr.mxu0 0.0
    %309 = vmatpush1.msra.mxu0 0.0
    %310 = vmatprep.subr.mxu0 0.0
    %311 = vmatpush1.msra.mxu0 0.0
    %312 = vmatprep.subr.mxu0 0.0
    %313 = vmatpush1.msra.mxu0 0.0
    %314 = vmatprep.subr.mxu0 0.0
    %315 = vmatpush1.msra.mxu0 0.0
    %316 = vmatprep.subr.mxu0 0.0
    %317 = vmatpush1.msra.mxu0 0.0
    %318 = vmatprep.mubr.f32.mxu0 0.0
    %319 = vmatmul.mubr.f32.gmra.mrb[0].mxu0 %v249
    %v320 = vpop.f32.mrb[0].mxu0
    %v321 = vadd.f32 %v246, %v320
    %v322 = vpop.f32.mrb[0].mxu0
    %323 = vmatprep.mubr.f32.mxu0 0.0
    %324 = vmatmul.mubr.f32.gmra.mrb[0].mxu0 %v252
    %v325 = vpop.f32.mrb[0].mxu0
    %v326 = vadd.f32 %v246, %v325
    %v327 = vpop.f32.mrb[0].mxu0
    %328 = vdwg.mxu0
    %329 = vst.msk [vmem:[#allocation3] sm:$0xff] %vm152, %v321
    %330 = vst.msk [vmem:[#allocation3 + $0x8] sm:$0xff] %vm152, %v326
    %v331 = vld [vmem:[#allocation15] sm:$0xff]
    %v332 = vld [vmem:[#allocation15 + $0x8] sm:$0xff]
    %v333 = vld [vmem:[#allocation15 + $0x10] sm:$0xff]
    %v334 = vld [vmem:[#allocation15 + $0x18] sm:$0xff]
    %v336 = vlaneseq
    %v337 = vshrl.u32 %v336, 7
    %v338 = vsub.s32 0, %v337
    %v339 = vrot.slane %v140, %v338
    %v342 = vsel %vm152, %v136, 0
    %v345 = vsel %vm152, %v137, 0
    %347 = vmatprep.subr.mxu0 0.0
    %348 = vmatpush1.msra.mxu0 %v331
    %349 = vmatprep.subr.mxu0 0.0
    %350 = vmatpush1.msra.mxu0 %v332
    %351 = vmatprep.subr.mxu0 0.0
    %352 = vmatpush1.msra.mxu0 %v333
    %353 = vmatprep.subr.mxu0 0.0
    %354 = vmatpush1.msra.mxu0 %v334
    %355 = vmatprep.subr.mxu0 0.0
    %356 = vmatpush1.msra.mxu0 0.0
    %357 = vmatprep.subr.mxu0 0.0
    %358 = vmatpush1.msra.mxu0 0.0
    %359 = vmatprep.subr.mxu0 0.0
    %360 = vmatpush1.msra.mxu0 0.0
    %361 = vmatprep.subr.mxu0 0.0
    %362 = vmatpush1.msra.mxu0 0.0
    %363 = vmatprep.subr.mxu0 0.0
    %364 = vmatpush1.msra.mxu0 0.0
    %365 = vmatprep.subr.mxu0 0.0
    %366 = vmatpush1.msra.mxu0 0.0
    %367 = vmatprep.subr.mxu0 0.0
    %368 = vmatpush1.msra.mxu0 0.0
    %369 = vmatprep.subr.mxu0 0.0
    %370 = vmatpush1.msra.mxu0 0.0
    %371 = vmatprep.subr.mxu0 0.0
    %372 = vmatpush1.msra.mxu0 0.0
    %373 = vmatprep.subr.mxu0 0.0
    %374 = vmatpush1.msra.mxu0 0.0
    %375 = vmatprep.subr.mxu0 0.0
    %376 = vmatpush1.msra.mxu0 0.0
    %377 = vmatprep.subr.mxu0 0.0
    %378 = vmatpush1.msra.mxu0 0.0
    %379 = vmatprep.subr.mxu0 0.0
    %380 = vmatpush1.msra.mxu0 0.0
    %381 = vmatprep.subr.mxu0 0.0
    %382 = vmatpush1.msra.mxu0 0.0
    %383 = vmatprep.subr.mxu0 0.0
    %384 = vmatpush1.msra.mxu0 0.0
    %385 = vmatprep.subr.mxu0 0.0
    %386 = vmatpush1.msra.mxu0 0.0
    %387 = vmatprep.subr.mxu0 0.0
    %388 = vmatpush1.msra.mxu0 0.0
    %389 = vmatprep.subr.mxu0 0.0
    %390 = vmatpush1.msra.mxu0 0.0
    %391 = vmatprep.subr.mxu0 0.0
    %392 = vmatpush1.msra.mxu0 0.0
    %393 = vmatprep.subr.mxu0 0.0
    %394 = vmatpush1.msra.mxu0 0.0
    %395 = vmatprep.subr.mxu0 0.0
    %396 = vmatpush1.msra.mxu0 0.0
    %397 = vmatprep.subr.mxu0 0.0
    %398 = vmatpush1.msra.mxu0 0.0
    %399 = vmatprep.subr.mxu0 0.0
    %400 = vmatpush1.msra.mxu0 0.0
    %401 = vmatprep.subr.mxu0 0.0
    %402 = vmatpush1.msra.mxu0 0.0
    %403 = vmatprep.subr.mxu0 0.0
    %404 = vmatpush1.msra.mxu0 0.0
    %405 = vmatprep.subr.mxu0 0.0
    %406 = vmatpush1.msra.mxu0 0.0
    %407 = vmatprep.subr.mxu0 0.0
    %408 = vmatpush1.msra.mxu0 0.0
    %409 = vmatprep.subr.mxu0 0.0
    %410 = vmatpush1.msra.mxu0 0.0
    %411 = vmatprep.mubr.f32.mxu0 0.0
    %412 = vmatmul.mubr.f32.gmra.mrb[0].mxu0 %v342
    %v413 = vpop.f32.mrb[0].mxu0
    %v414 = vadd.f32 %v339, %v413
    %v415 = vpop.f32.mrb[0].mxu0
    %416 = vmatprep.mubr.f32.mxu0 0.0
    %417 = vmatmul.mubr.f32.gmra.mrb[0].mxu0 %v345
    %v418 = vpop.f32.mrb[0].mxu0
    %v419 = vadd.f32 %v339, %v418
    %v420 = vpop.f32.mrb[0].mxu0
    %421 = vdwg.mxu0
    %422 = vst.msk [vmem:[#allocation4] sm:$0xff] %vm152, %v414
    %423 = vst.msk [vmem:[#allocation4 + $0x8] sm:$0xff] %vm152, %v419
    loop: start=0, step=1, limit=2
    $region74: #{tpu_custom_call.1} parent=1 // loop_pre_header
      _
    $region75: #{tpu_custom_call.1} parent=1 // loop_header
      %s425 = sphi 0, %s429
      %p426 = scmp.ge.s32.totalorder %s425, 2
    $region76: #{tpu_custom_call.1} parent=1 // loop_header_branch
      %428 = sbr.rel (%p426) target = $region80
    $region77: #{tpu_custom_call.1} parent=1 // loop_body
      %s430 = smul.u32 %s425, 8
      %s431 = scalar_lea.vmem [#allocation2], %s430
      %v432 = vld [vmem:[%s431] sm:$0xff]
      %s433 = scalar_lea.vmem [#allocation3], %s430
      %v434 = vld [vmem:[%s433] sm:$0xff]
      %s435 = scalar_lea.vmem [#allocation4], %s430
      %v436 = vld [vmem:[%s435] sm:$0xff]
      %vm437 = vcmask 64512
      %v439 = vsel %vm437, %v432, 0
      %v442 = vsel %vm437, %v434, 0
      %444 = vmatprep.subr.mxu0 0.0
      %445 = vmatpush1.xpose.msra.mxu0 %v442
      %446 = vmatprep.subr.mxu0 0.0
      %447 = vmatpush1.xpose.msra.mxu0 0.0
      %448 = vmatprep.subr.mxu0 0.0
      %449 = vmatpush1.xpose.msra.mxu0 0.0
      %450 = vmatprep.subr.mxu0 0.0
      %451 = vmatpush1.xpose.msra.mxu0 0.0
      %452 = vmatprep.subr.mxu0 0.0
      %453 = vmatpush1.xpose.msra.mxu0 0.0
      %454 = vmatprep.subr.mxu0 0.0
      %455 = vmatpush1.xpose.msra.mxu0 0.0
      %456 = vmatprep.subr.mxu0 0.0
      %457 = vmatpush1.xpose.msra.mxu0 0.0
      %458 = vmatprep.subr.mxu0 0.0
      %459 = vmatpush1.xpose.msra.mxu0 0.0
      %460 = vmatprep.subr.mxu0 0.0
      %461 = vmatpush1.xpose.msra.mxu0 0.0
      %462 = vmatprep.subr.mxu0 0.0
      %463 = vmatpush1.xpose.msra.mxu0 0.0
      %464 = vmatprep.subr.mxu0 0.0
      %465 = vmatpush1.xpose.msra.mxu0 0.0
      %466 = vmatprep.subr.mxu0 0.0
      %467 = vmatpush1.xpose.msra.mxu0 0.0
      %468 = vmatprep.subr.mxu0 0.0
      %469 = vmatpush1.xpose.msra.mxu0 0.0
      %470 = vmatprep.subr.mxu0 0.0
      %471 = vmatpush1.xpose.msra.mxu0 0.0
      %472 = vmatprep.subr.mxu0 0.0
      %473 = vmatpush1.xpose.msra.mxu0 0.0
      %474 = vmatprep.subr.mxu0 0.0
      %475 = vmatpush1.xpose.msra.mxu0 0.0
      %476 = vmatprep.subr.mxu0 0.0
      %477 = vmatpush1.xpose.msra.mxu0 0.0
      %478 = vmatprep.subr.mxu0 0.0
      %479 = vmatpush1.xpose.msra.mxu0 0.0
      %480 = vmatprep.subr.mxu0 0.0
      %481 = vmatpush1.xpose.msra.mxu0 0.0
      %482 = vmatprep.subr.mxu0 0.0
      %483 = vmatpush1.xpose.msra.mxu0 0.0
      %484 = vmatprep.subr.mxu0 0.0
      %485 = vmatpush1.xpose.msra.mxu0 0.0
      %486 = vmatprep.subr.mxu0 0.0
      %487 = vmatpush1.xpose.msra.mxu0 0.0
      %488 = vmatprep.subr.mxu0 0.0
      %489 = vmatpush1.xpose.msra.mxu0 0.0
      %490 = vmatprep.subr.mxu0 0.0
      %491 = vmatpush1.xpose.msra.mxu0 0.0
      %492 = vmatprep.subr.mxu0 0.0
      %493 = vmatpush1.xpose.msra.mxu0 0.0
      %494 = vmatprep.subr.mxu0 0.0
      %495 = vmatpush1.xpose.msra.mxu0 0.0
      %496 = vmatprep.subr.mxu0 0.0
      %497 = vmatpush1.xpose.msra.mxu0 0.0
      %498 = vmatprep.subr.mxu0 0.0
      %499 = vmatpush1.xpose.msra.mxu0 0.0
      %500 = vmatprep.subr.mxu0 0.0
      %501 = vmatpush1.xpose.msra.mxu0 0.0
      %502 = vmatprep.subr.mxu0 0.0
      %503 = vmatpush1.xpose.msra.mxu0 0.0
      %504 = vmatprep.subr.mxu0 0.0
      %505 = vmatpush1.xpose.msra.mxu0 0.0
      %506 = vmatprep.subr.mxu0 0.0
      %507 = vmatpush1.xpose.msra.mxu0 0.0
      %508 = vmatprep.mubr.f32.mxu0 0.0
      %509 = vmatmul.mubr.f32.gmra.mrb[0].mxu0 %v439
      %v510 = vpop.f32.mrb[0].mxu0
      %v511 = vadd.f32 0.0, %v510
      %v512 = vpop.f32.mrb[0].mxu0
      %513 = vdwg.mxu0
      %v514 = vsel %vm437, %v511, -inf
      %515 = vmax.xlane.f32.xlu0 %v514
      %v516 = vpop.xlane.xlu0 %515
      %v517 = vsub.f32 %v511, %v516
      %v518 = vmul.f32 %v517, 1.442695
      %v519 = vpow.pop %v518
      %v520 = vsel %vm437, %v519, 0.0
      %521 = vadd.xlane.f32.xlu0 %v520
      %v522 = vpop.xlane.xlu0 %521
      %v523 = vrcp.pop %v522
      %v524 = vmul.f32 %v519, %v523
      %v526 = vsel %vm437, %v524, 0
      %528 = vmatprep.subr.mxu0 0.0
      %529 = vmatpush1.msra.mxu0 %v436
      %530 = vmatprep.subr.mxu0 0.0
      %531 = vmatpush1.msra.mxu0 0.0
      %532 = vmatprep.subr.mxu0 0.0
      %533 = vmatpush1.msra.mxu0 0.0
      %534 = vmatprep.subr.mxu0 0.0
      %535 = vmatpush1.msra.mxu0 0.0
      %536 = vmatprep.subr.mxu0 0.0
      %537 = vmatpush1.msra.mxu0 0.0
      %538 = vmatprep.subr.mxu0 0.0
      %539 = vmatpush1.msra.mxu0 0.0
      %540 = vmatprep.subr.mxu0 0.0
      %541 = vmatpush1.msra.mxu0 0.0
      %542 = vmatprep.subr.mxu0 0.0
      %543 = vmatpush1.msra.mxu0 0.0
      %544 = vmatprep.subr.mxu0 0.0
      %545 = vmatpush1.msra.mxu0 0.0
      %546 = vmatprep.subr.mxu0 0.0
      %547 = vmatpush1.msra.mxu0 0.0
      %548 = vmatprep.subr.mxu0 0.0
      %549 = vmatpush1.msra.mxu0 0.0
      %550 = vmatprep.subr.mxu0 0.0
      %551 = vmatpush1.msra.mxu0 0.0
      %552 = vmatprep.subr.mxu0 0.0
      %553 = vmatpush1.msra.mxu0 0.0
      %554 = vmatprep.subr.mxu0 0.0
      %555 = vmatpush1.msra.mxu0 0.0
      %556 = vmatprep.subr.mxu0 0.0
      %557 = vmatpush1.msra.mxu0 0.0
      %558 = vmatprep.subr.mxu0 0.0
      %559 = vmatpush1.msra.mxu0 0.0
      %560 = vmatprep.subr.mxu0 0.0
      %561 = vmatpush1.msra.mxu0 0.0
      %562 = vmatprep.subr.mxu0 0.0
      %563 = vmatpush1.msra.mxu0 0.0
      %564 = vmatprep.subr.mxu0 0.0
      %565 = vmatpush1.msra.mxu0 0.0
      %566 = vmatprep.subr.mxu0 0.0
      %567 = vmatpush1.msra.mxu0 0.0
      %568 = vmatprep.subr.mxu0 0.0
      %569 = vmatpush1.msra.mxu0 0.0
      %570 = vmatprep.subr.mxu0 0.0
      %571 = vmatpush1.msra.mxu0 0.0
      %572 = vmatprep.subr.mxu0 0.0
      %573 = vmatpush1.msra.mxu0 0.0
      %574 = vmatprep.subr.mxu0 0.0
      %575 = vmatpush1.msra.mxu0 0.0
      %576 = vmatprep.subr.mxu0 0.0
      %577 = vmatpush1.msra.mxu0 0.0
      %578 = vmatprep.subr.mxu0 0.0
      %579 = vmatpush1.msra.mxu0 0.0
      %580 = vmatprep.subr.mxu0 0.0
      %581 = vmatpush1.msra.mxu0 0.0
      %582 = vmatprep.subr.mxu0 0.0
      %583 = vmatpush1.msra.mxu0 0.0
      %584 = vmatprep.subr.mxu0 0.0
      %585 = vmatpush1.msra.mxu0 0.0
      %586 = vmatprep.subr.mxu0 0.0
      %587 = vmatpush1.msra.mxu0 0.0
      %588 = vmatprep.subr.mxu0 0.0
      %589 = vmatpush1.msra.mxu0 0.0
      %590 = vmatprep.subr.mxu0 0.0
      %591 = vmatpush1.msra.mxu0 0.0
      %592 = vmatprep.mubr.f32.mxu0 0.0
      %593 = vmatmul.mubr.f32.gmra.mrb[0].mxu0 %v526
      %v594 = vpop.f32.mrb[0].mxu0
      %v595 = vadd.f32 0.0, %v594
      %v596 = vpop.f32.mrb[0].mxu0
      %597 = vdwg.mxu0
      %s598 = scalar_lea.vmem [#allocation5], %s430
      %599 = vst.msk [vmem:[%s598] sm:$0xff] %vm437, %v595
      %v600 = vld [vmem:[%s431] sm:$0xff]
      %v601 = vld [vmem:[%s433] sm:$0xff]
      %v602 = vld [vmem:[%s435] sm:$0xff]
      %604 = vrot.lane.b32.xlu0 %v600, 120
      %v605 = vpop.permute.xlu0 %604
      %607 = vrot.lane.b32.xlu0 %v601, 120
      %v608 = vpop.permute.xlu0 %607
      %v609 = vsel %vm437, %v605, 0
      %v611 = vsel %vm437, %v608, 0
      %613 = vmatprep.subr.mxu0 0.0
      %614 = vmatpush1.xpose.msra.mxu0 %v611
      %615 = vmatprep.subr.mxu0 0.0
      %616 = vmatpush1.xpose.msra.mxu0 0.0
      %617 = vmatprep.subr.mxu0 0.0
      %618 = vmatpush1.xpose.msra.mxu0 0.0
      %619 = vmatprep.subr.mxu0 0.0
      %620 = vmatpush1.xpose.msra.mxu0 0.0
      %621 = vmatprep.subr.mxu0 0.0
      %622 = vmatpush1.xpose.msra.mxu0 0.0
      %623 = vmatprep.subr.mxu0 0.0
      %624 = vmatpush1.xpose.msra.mxu0 0.0
      %625 = vmatprep.subr.mxu0 0.0
      %626 = vmatpush1.xpose.msra.mxu0 0.0
      %627 = vmatprep.subr.mxu0 0.0
      %628 = vmatpush1.xpose.msra.mxu0 0.0
      %629 = vmatprep.subr.mxu0 0.0
      %630 = vmatpush1.xpose.msra.mxu0 0.0
      %631 = vmatprep.subr.mxu0 0.0
      %632 = vmatpush1.xpose.msra.mxu0 0.0
      %633 = vmatprep.subr.mxu0 0.0
      %634 = vmatpush1.xpose.msra.mxu0 0.0
      %635 = vmatprep.subr.mxu0 0.0
      %636 = vmatpush1.xpose.msra.mxu0 0.0
      %637 = vmatprep.subr.mxu0 0.0
      %638 = vmatpush1.xpose.msra.mxu0 0.0
      %639 = vmatprep.subr.mxu0 0.0
      %640 = vmatpush1.xpose.msra.mxu0 0.0
      %641 = vmatprep.subr.mxu0 0.0
      %642 = vmatpush1.xpose.msra.mxu0 0.0
      %643 = vmatprep.subr.mxu0 0.0
      %644 = vmatpush1.xpose.msra.mxu0 0.0
      %645 = vmatprep.subr.mxu0 0.0
      %646 = vmatpush1.xpose.msra.mxu0 0.0
      %647 = vmatprep.subr.mxu0 0.0
      %648 = vmatpush1.xpose.msra.mxu0 0.0
      %649 = vmatprep.subr.mxu0 0.0
      %650 = vmatpush1.xpose.msra.mxu0 0.0
      %651 = vmatprep.subr.mxu0 0.0
      %652 = vmatpush1.xpose.msra.mxu0 0.0
      %653 = vmatprep.subr.mxu0 0.0
      %654 = vmatpush1.xpose.msra.mxu0 0.0
      %655 = vmatprep.subr.mxu0 0.0
      %656 = vmatpush1.xpose.msra.mxu0 0.0
      %657 = vmatprep.subr.mxu0 0.0
      %658 = vmatpush1.xpose.msra.mxu0 0.0
      %659 = vmatprep.subr.mxu0 0.0
      %660 = vmatpush1.xpose.msra.mxu0 0.0
      %661 = vmatprep.subr.mxu0 0.0
      %662 = vmatpush1.xpose.msra.mxu0 0.0
      %663 = vmatprep.subr.mxu0 0.0
      %664 = vmatpush1.xpose.msra.mxu0 0.0
      %665 = vmatprep.subr.mxu0 0.0
      %666 = vmatpush1.xpose.msra.mxu0 0.0
      %667 = vmatprep.subr.mxu0 0.0
      %668 = vmatpush1.xpose.msra.mxu0 0.0
      %669 = vmatprep.subr.mxu0 0.0
      %670 = vmatpush1.xpose.msra.mxu0 0.0
      %671 = vmatprep.subr.mxu0 0.0
      %672 = vmatpush1.xpose.msra.mxu0 0.0
      %673 = vmatprep.subr.mxu0 0.0
      %674 = vmatpush1.xpose.msra.mxu0 0.0
      %675 = vmatprep.subr.mxu0 0.0
      %676 = vmatpush1.xpose.msra.mxu0 0.0
      %677 = vmatprep.mubr.f32.mxu0 0.0
      %678 = vmatmul.mubr.f32.gmra.mrb[0].mxu0 %v609
      %v679 = vpop.f32.mrb[0].mxu0
      %v680 = vadd.f32 0.0, %v679
      %v681 = vpop.f32.mrb[0].mxu0
      %682 = vdwg.mxu0
      %v683 = vsel %vm437, %v680, -inf
      %684 = vmax.xlane.f32.xlu0 %v683
      %v685 = vpop.xlane.xlu0 %684
      %v686 = vsub.f32 %v680, %v685
      %v687 = vmul.f32 %v686, 1.442695
      %v688 = vpow.pop %v687
      %v689 = vsel %vm437, %v688, 0.0
      %690 = vadd.xlane.f32.xlu0 %v689
      %v691 = vpop.xlane.xlu0 %690
      %v692 = vrcp.pop %v691
      %v693 = vmul.f32 %v688, %v692
      %695 = vrot.lane.b32.xlu0 %v602, 120
      %v696 = vpop.permute.xlu0 %695
      %v699 = vsel %vm437, %v693, 0
      %701 = vmatprep.subr.mxu0 0.0
      %702 = vmatpush1.msra.mxu0 %v696
      %703 = vmatprep.subr.mxu0 0.0
      %704 = vmatpush1.msra.mxu0 0.0
      %705 = vmatprep.subr.mxu0 0.0
      %706 = vmatpush1.msra.mxu0 0.0
      %707 = vmatprep.subr.mxu0 0.0
      %708 = vmatpush1.msra.mxu0 0.0
      %709 = vmatprep.subr.mxu0 0.0
      %710 = vmatpush1.msra.mxu0 0.0
      %711 = vmatprep.subr.mxu0 0.0
      %712 = vmatpush1.msra.mxu0 0.0
      %713 = vmatprep.subr.mxu0 0.0
      %714 = vmatpush1.msra.mxu0 0.0
      %715 = vmatprep.subr.mxu0 0.0
      %716 = vmatpush1.msra.mxu0 0.0
      %717 = vmatprep.subr.mxu0 0.0
      %718 = vmatpush1.msra.mxu0 0.0
      %719 = vmatprep.subr.mxu0 0.0
      %720 = vmatpush1.msra.mxu0 0.0
      %721 = vmatprep.subr.mxu0 0.0
      %722 = vmatpush1.msra.mxu0 0.0
      %723 = vmatprep.subr.mxu0 0.0
      %724 = vmatpush1.msra.mxu0 0.0
      %725 = vmatprep.subr.mxu0 0.0
      %726 = vmatpush1.msra.mxu0 0.0
      %727 = vmatprep.subr.mxu0 0.0
      %728 = vmatpush1.msra.mxu0 0.0
      %729 = vmatprep.subr.mxu0 0.0
      %730 = vmatpush1.msra.mxu0 0.0
      %731 = vmatprep.subr.mxu0 0.0
      %732 = vmatpush1.msra.mxu0 0.0
      %733 = vmatprep.subr.mxu0 0.0
      %734 = vmatpush1.msra.mxu0 0.0
      %735 = vmatprep.subr.mxu0 0.0
      %736 = vmatpush1.msra.mxu0 0.0
      %737 = vmatprep.subr.mxu0 0.0
      %738 = vmatpush1.msra.mxu0 0.0
      %739 = vmatprep.subr.mxu0 0.0
      %740 = vmatpush1.msra.mxu0 0.0
      %741 = vmatprep.subr.mxu0 0.0
      %742 = vmatpush1.msra.mxu0 0.0
      %743 = vmatprep.subr.mxu0 0.0
      %744 = vmatpush1.msra.mxu0 0.0
      %745 = vmatprep.subr.mxu0 0.0
      %746 = vmatpush1.msra.mxu0 0.0
      %747 = vmatprep.subr.mxu0 0.0
      %748 = vmatpush1.msra.mxu0 0.0
      %749 = vmatprep.subr.mxu0 0.0
      %750 = vmatpush1.msra.mxu0 0.0
      %751 = vmatprep.subr.mxu0 0.0
      %752 = vmatpush1.msra.mxu0 0.0
      %753 = vmatprep.subr.mxu0 0.0
      %754 = vmatpush1.msra.mxu0 0.0
      %755 = vmatprep.subr.mxu0 0.0
      %756 = vmatpush1.msra.mxu0 0.0
      %757 = vmatprep.subr.mxu0 0.0
      %758 = vmatpush1.msra.mxu0 0.0
      %759 = vmatprep.subr.mxu0 0.0
      %760 = vmatpush1.msra.mxu0 0.0
      %761 = vmatprep.subr.mxu0 0.0
      %762 = vmatpush1.msra.mxu0 0.0
      %763 = vmatprep.subr.mxu0 0.0
      %764 = vmatpush1.msra.mxu0 0.0
      %765 = vmatprep.mubr.f32.mxu0 0.0
      %766 = vmatmul.mubr.f32.gmra.mrb[0].mxu0 %v699
      %v767 = vpop.f32.mrb[0].mxu0
      %v768 = vadd.f32 0.0, %v767
      %v769 = vpop.f32.mrb[0].mxu0
      %770 = vdwg.mxu0
      %772 = vrot.lane.b32.xlu0 %v768, 8
      %v773 = vpop.permute.xlu0 %772
      %vm775 = vcmask 130112
      %776 = vst.msk [vmem:[%s598] sm:$0xff] %vm775, %v773
      %v777 = vld [vmem:[%s431] sm:$0xff]
      %v778 = vld [vmem:[%s433] sm:$0xff]
      %v779 = vld [vmem:[%s435] sm:$0xff]
      %781 = vrot.lane.b32.xlu0 %v777, 112
      %v782 = vpop.permute.xlu0 %781
      %784 = vrot.lane.b32.xlu0 %v778, 112
      %v785 = vpop.permute.xlu0 %784
      %v786 = vsel %vm437, %v782, 0
      %v788 = vsel %vm437, %v785, 0
      %790 = vmatprep.subr.mxu0 0.0
      %791 = vmatpush1.xpose.msra.mxu0 %v788
      %792 = vmatprep.subr.mxu0 0.0
      %793 = vmatpush1.xpose.msra.mxu0 0.0
      %794 = vmatprep.subr.mxu0 0.0
      %795 = vmatpush1.xpose.msra.mxu0 0.0
      %796 = vmatprep.subr.mxu0 0.0
      %797 = vmatpush1.xpose.msra.mxu0 0.0
      %798 = vmatprep.subr.mxu0 0.0
      %799 = vmatpush1.xpose.msra.mxu0 0.0
      %800 = vmatprep.subr.mxu0 0.0
      %801 = vmatpush1.xpose.msra.mxu0 0.0
      %802 = vmatprep.subr.mxu0 0.0
      %803 = vmatpush1.xpose.msra.mxu0 0.0
      %804 = vmatprep.subr.mxu0 0.0
      %805 = vmatpush1.xpose.msra.mxu0 0.0
      %806 = vmatprep.subr.mxu0 0.0
      %807 = vmatpush1.xpose.msra.mxu0 0.0
      %808 = vmatprep.subr.mxu0 0.0
      %809 = vmatpush1.xpose.msra.mxu0 0.0
      %810 = vmatprep.subr.mxu0 0.0
      %811 = vmatpush1.xpose.msra.mxu0 0.0
      %812 = vmatprep.subr.mxu0 0.0
      %813 = vmatpush1.xpose.msra.mxu0 0.0
      %814 = vmatprep.subr.mxu0 0.0
      %815 = vmatpush1.xpose.msra.mxu0 0.0
      %816 = vmatprep.subr.mxu0 0.0
      %817 = vmatpush1.xpose.msra.mxu0 0.0
      %818 = vmatprep.subr.mxu0 0.0
      %819 = vmatpush1.xpose.msra.mxu0 0.0
      %820 = vmatprep.subr.mxu0 0.0
      %821 = vmatpush1.xpose.msra.mxu0 0.0
      %822 = vmatprep.subr.mxu0 0.0
      %823 = vmatpush1.xpose.msra.mxu0 0.0
      %824 = vmatprep.subr.mxu0 0.0
      %825 = vmatpush1.xpose.msra.mxu0 0.0
      %826 = vmatprep.subr.mxu0 0.0
      %827 = vmatpush1.xpose.msra.mxu0 0.0
      %828 = vmatprep.subr.mxu0 0.0
      %829 = vmatpush1.xpose.msra.mxu0 0.0
      %830 = vmatprep.subr.mxu0 0.0
      %831 = vmatpush1.xpose.msra.mxu0 0.0
      %832 = vmatprep.subr.mxu0 0.0
      %833 = vmatpush1.xpose.msra.mxu0 0.0
      %834 = vmatprep.subr.mxu0 0.0
      %835 = vmatpush1.xpose.msra.mxu0 0.0
      %836 = vmatprep.subr.mxu0 0.0
      %837 = vmatpush1.xpose.msra.mxu0 0.0
      %838 = vmatprep.subr.mxu0 0.0
      %839 = vmatpush1.xpose.msra.mxu0 0.0
      %840 = vmatprep.subr.mxu0 0.0
      %841 = vmatpush1.xpose.msra.mxu0 0.0
      %842 = vmatprep.subr.mxu0 0.0
      %843 = vmatpush1.xpose.msra.mxu0 0.0
      %844 = vmatprep.subr.mxu0 0.0
      %845 = vmatpush1.xpose.msra.mxu0 0.0
      %846 = vmatprep.subr.mxu0 0.0
      %847 = vmatpush1.xpose.msra.mxu0 0.0
      %848 = vmatprep.subr.mxu0 0.0
      %849 = vmatpush1.xpose.msra.mxu0 0.0
      %850 = vmatprep.subr.mxu0 0.0
      %851 = vmatpush1.xpose.msra.mxu0 0.0
      %852 = vmatprep.subr.mxu0 0.0
      %853 = vmatpush1.xpose.msra.mxu0 0.0
      %854 = vmatprep.mubr.f32.mxu0 0.0
      %855 = vmatmul.mubr.f32.gmra.mrb[0].mxu0 %v786
      %v856 = vpop.f32.mrb[0].mxu0
      %v857 = vadd.f32 0.0, %v856
      %v858 = vpop.f32.mrb[0].mxu0
      %859 = vdwg.mxu0
      %v860 = vsel %vm437, %v857, -inf
      %861 = vmax.xlane.f32.xlu0 %v860
      %v862 = vpop.xlane.xlu0 %861
      %v863 = vsub.f32 %v857, %v862
      %v864 = vmul.f32 %v863, 1.442695
      %v865 = vpow.pop %v864
      %v866 = vsel %vm437, %v865, 0.0
      %867 = vadd.xlane.f32.xlu0 %v866
      %v868 = vpop.xlane.xlu0 %867
      %v869 = vrcp.pop %v868
      %v870 = vmul.f32 %v865, %v869
      %872 = vrot.lane.b32.xlu0 %v779, 112
      %v873 = vpop.permute.xlu0 %872
      %v876 = vsel %vm437, %v870, 0
      %878 = vmatprep.subr.mxu0 0.0
      %879 = vmatpush1.msra.mxu0 %v873
      %880 = vmatprep.subr.mxu0 0.0
      %881 = vmatpush1.msra.mxu0 0.0
      %882 = vmatprep.subr.mxu0 0.0
      %883 = vmatpush1.msra.mxu0 0.0
      %884 = vmatprep.subr.mxu0 0.0
      %885 = vmatpush1.msra.mxu0 0.0
      %886 = vmatprep.subr.mxu0 0.0
      %887 = vmatpush1.msra.mxu0 0.0
      %888 = vmatprep.subr.mxu0 0.0
      %889 = vmatpush1.msra.mxu0 0.0
      %890 = vmatprep.subr.mxu0 0.0
      %891 = vmatpush1.msra.mxu0 0.0
      %892 = vmatprep.subr.mxu0 0.0
      %893 = vmatpush1.msra.mxu0 0.0
      %894 = vmatprep.subr.mxu0 0.0
      %895 = vmatpush1.msra.mxu0 0.0
      %896 = vmatprep.subr.mxu0 0.0
      %897 = vmatpush1.msra.mxu0 0.0
      %898 = vmatprep.subr.mxu0 0.0
      %899 = vmatpush1.msra.mxu0 0.0
      %900 = vmatprep.subr.mxu0 0.0
      %901 = vmatpush1.msra.mxu0 0.0
      %902 = vmatprep.subr.mxu0 0.0
      %903 = vmatpush1.msra.mxu0 0.0
      %904 = vmatprep.subr.mxu0 0.0
      %905 = vmatpush1.msra.mxu0 0.0
      %906 = vmatprep.subr.mxu0 0.0
      %907 = vmatpush1.msra.mxu0 0.0
      %908 = vmatprep.subr.mxu0 0.0
      %909 = vmatpush1.msra.mxu0 0.0
      %910 = vmatprep.subr.mxu0 0.0
      %911 = vmatpush1.msra.mxu0 0.0
      %912 = vmatprep.subr.mxu0 0.0
      %913 = vmatpush1.msra.mxu0 0.0
      %914 = vmatprep.subr.mxu0 0.0
      %915 = vmatpush1.msra.mxu0 0.0
      %916 = vmatprep.subr.mxu0 0.0
      %917 = vmatpush1.msra.mxu0 0.0
      %918 = vmatprep.subr.mxu0 0.0
      %919 = vmatpush1.msra.mxu0 0.0
      %920 = vmatprep.subr.mxu0 0.0
      %921 = vmatpush1.msra.mxu0 0.0
      %922 = vmatprep.subr.mxu0 0.0
      %923 = vmatpush1.msra.mxu0 0.0
      %924 = vmatprep.subr.mxu0 0.0
      %925 = vmatpush1.msra.mxu0 0.0
      %926 = vmatprep.subr.mxu0 0.0
      %927 = vmatpush1.msra.mxu0 0.0
      %928 = vmatprep.subr.mxu0 0.0
      %929 = vmatpush1.msra.mxu0 0.0
      %930 = vmatprep.subr.mxu0 0.0
      %931 = vmatpush1.msra.mxu0 0.0
      %932 = vmatprep.subr.mxu0 0.0
      %933 = vmatpush1.msra.mxu0 0.0
      %934 = vmatprep.subr.mxu0 0.0
      %935 = vmatpush1.msra.mxu0 0.0
      %936 = vmatprep.subr.mxu0 0.0
      %937 = vmatpush1.msra.mxu0 0.0
      %938 = vmatprep.subr.mxu0 0.0
      %939 = vmatpush1.msra.mxu0 0.0
      %940 = vmatprep.subr.mxu0 0.0
      %941 = vmatpush1.msra.mxu0 0.0
      %942 = vmatprep.mubr.f32.mxu0 0.0
      %943 = vmatmul.mubr.f32.gmra.mrb[0].mxu0 %v876
      %v944 = vpop.f32.mrb[0].mxu0
      %v945 = vadd.f32 0.0, %v944
      %v946 = vpop.f32.mrb[0].mxu0
      %947 = vdwg.mxu0
      %949 = vrot.lane.b32.xlu0 %v945, 16
      %v950 = vpop.permute.xlu0 %949
      %vm952 = vcmask 195712
      %953 = vst.msk [vmem:[%s598] sm:$0xff] %vm952, %v950
      %v954 = vld [vmem:[%s431] sm:$0xff]
      %v955 = vld [vmem:[%s433] sm:$0xff]
      %v956 = vld [vmem:[%s435] sm:$0xff]
      %958 = vrot.lane.b32.xlu0 %v954, 104
      %v959 = vpop.permute.xlu0 %958
      %961 = vrot.lane.b32.xlu0 %v955, 104
      %v962 = vpop.permute.xlu0 %961
      %v963 = vsel %vm437, %v959, 0
      %v965 = vsel %vm437, %v962, 0
      %967 = vmatprep.subr.mxu0 0.0
      %968 = vmatpush1.xpose.msra.mxu0 %v965
      %969 = vmatprep.subr.mxu0 0.0
      %970 = vmatpush1.xpose.msra.mxu0 0.0
      %971 = vmatprep.subr.mxu0 0.0
      %972 = vmatpush1.xpose.msra.mxu0 0.0
      %973 = vmatprep.subr.mxu0 0.0
      %974 = vmatpush1.xpose.msra.mxu0 0.0
      %975 = vmatprep.subr.mxu0 0.0
      %976 = vmatpush1.xpose.msra.mxu0 0.0
      %977 = vmatprep.subr.mxu0 0.0
      %978 = vmatpush1.xpose.msra.mxu0 0.0
      %979 = vmatprep.subr.mxu0 0.0
      %980 = vmatpush1.xpose.msra.mxu0 0.0
      %981 = vmatprep.subr.mxu0 0.0
      %982 = vmatpush1.xpose.msra.mxu0 0.0
      %983 = vmatprep.subr.mxu0 0.0
      %984 = vmatpush1.xpose.msra.mxu0 0.0
      %985 = vmatprep.subr.mxu0 0.0
      %986 = vmatpush1.xpose.msra.mxu0 0.0
      %987 = vmatprep.subr.mxu0 0.0
      %988 = vmatpush1.xpose.msra.mxu0 0.0
      %989 = vmatprep.subr.mxu0 0.0
      %990 = vmatpush1.xpose.msra.mxu0 0.0
      %991 = vmatprep.subr.mxu0 0.0
      %992 = vmatpush1.xpose.msra.mxu0 0.0
      %993 = vmatprep.subr.mxu0 0.0
      %994 = vmatpush1.xpose.msra.mxu0 0.0
      %995 = vmatprep.subr.mxu0 0.0
      %996 = vmatpush1.xpose.msra.mxu0 0.0
      %997 = vmatprep.subr.mxu0 0.0
      %998 = vmatpush1.xpose.msra.mxu0 0.0
      %999 = vmatprep.subr.mxu0 0.0
      %1000 = vmatpush1.xpose.msra.mxu0 0.0
      %1001 = vmatprep.subr.mxu0 0.0
      %1002 = vmatpush1.xpose.msra.mxu0 0.0
      %1003 = vmatprep.subr.mxu0 0.0
      %1004 = vmatpush1.xpose.msra.mxu0 0.0
      %1005 = vmatprep.subr.mxu0 0.0
      %1006 = vmatpush1.xpose.msra.mxu0 0.0
      %1007 = vmatprep.subr.mxu0 0.0
      %1008 = vmatpush1.xpose.msra.mxu0 0.0
      %1009 = vmatprep.subr.mxu0 0.0
      %1010 = vmatpush1.xpose.msra.mxu0 0.0
      %1011 = vmatprep.subr.mxu0 0.0
      %1012 = vmatpush1.xpose.msra.mxu0 0.0
      %1013 = vmatprep.subr.mxu0 0.0
      %1014 = vmatpush1.xpose.msra.mxu0 0.0
      %1015 = vmatprep.subr.mxu0 0.0
      %1016 = vmatpush1.xpose.msra.mxu0 0.0
      %1017 = vmatprep.subr.mxu0 0.0
      %1018 = vmatpush1.xpose.msra.mxu0 0.0
      %1019 = vmatprep.subr.mxu0 0.0
      %1020 = vmatpush1.xpose.msra.mxu0 0.0
      %1021 = vmatprep.subr.mxu0 0.0
      %1022 = vmatpush1.xpose.msra.mxu0 0.0
      %1023 = vmatprep.subr.mxu0 0.0
      %1024 = vmatpush1.xpose.msra.mxu0 0.0
      %1025 = vmatprep.subr.mxu0 0.0
      %1026 = vmatpush1.xpose.msra.mxu0 0.0
      %1027 = vmatprep.subr.mxu0 0.0
      %1028 = vmatpush1.xpose.msra.mxu0 0.0
      %1029 = vmatprep.subr.mxu0 0.0
      %1030 = vmatpush1.xpose.msra.mxu0 0.0
      %1031 = vmatprep.mubr.f32.mxu0 0.0
      %1032 = vmatmul.mubr.f32.gmra.mrb[0].mxu0 %v963
      %v1033 = vpop.f32.mrb[0].mxu0
      %v1034 = vadd.f32 0.0, %v1033
      %v1035 = vpop.f32.mrb[0].mxu0
      %1036 = vdwg.mxu0
      %v1037 = vsel %vm437, %v1034, -inf
      %1038 = vmax.xlane.f32.xlu0 %v1037
      %v1039 = vpop.xlane.xlu0 %1038
      %v1040 = vsub.f32 %v1034, %v1039
      %v1041 = vmul.f32 %v1040, 1.442695
      %v1042 = vpow.pop %v1041
      %v1043 = vsel %vm437, %v1042, 0.0
      %1044 = vadd.xlane.f32.xlu0 %v1043
      %v1045 = vpop.xlane.xlu0 %1044
      %v1046 = vrcp.pop %v1045
      %v1047 = vmul.f32 %v1042, %v1046
      %1049 = vrot.lane.b32.xlu0 %v956, 104
      %v1050 = vpop.permute.xlu0 %1049
      %v1053 = vsel %vm437, %v1047, 0
      %1055 = vmatprep.subr.mxu0 0.0
      %1056 = vmatpush1.msra.mxu0 %v1050
      %1057 = vmatprep.subr.mxu0 0.0
      %1058 = vmatpush1.msra.mxu0 0.0
      %1059 = vmatprep.subr.mxu0 0.0
      %1060 = vmatpush1.msra.mxu0 0.0
      %1061 = vmatprep.subr.mxu0 0.0
      %1062 = vmatpush1.msra.mxu0 0.0
      %1063 = vmatprep.subr.mxu0 0.0
      %1064 = vmatpush1.msra.mxu0 0.0
      %1065 = vmatprep.subr.mxu0 0.0
      %1066 = vmatpush1.msra.mxu0 0.0
      %1067 = vmatprep.subr.mxu0 0.0
      %1068 = vmatpush1.msra.mxu0 0.0
      %1069 = vmatprep.subr.mxu0 0.0
      %1070 = vmatpush1.msra.mxu0 0.0
      %1071 = vmatprep.subr.mxu0 0.0
      %1072 = vmatpush1.msra.mxu0 0.0
      %1073 = vmatprep.subr.mxu0 0.0
      %1074 = vmatpush1.msra.mxu0 0.0
      %1075 = vmatprep.subr.mxu0 0.0
      %1076 = vmatpush1.msra.mxu0 0.0
      %1077 = vmatprep.subr.mxu0 0.0
      %1078 = vmatpush1.msra.mxu0 0.0
      %1079 = vmatprep.subr.mxu0 0.0
      %1080 = vmatpush1.msra.mxu0 0.0
      %1081 = vmatprep.subr.mxu0 0.0
      %1082 = vmatpush1.msra.mxu0 0.0
      %1083 = vmatprep.subr.mxu0 0.0
      %1084 = vmatpush1.msra.mxu0 0.0
      %1085 = vmatprep.subr.mxu0 0.0
      %1086 = vmatpush1.msra.mxu0 0.0
      %1087 = vmatprep.subr.mxu0 0.0
      %1088 = vmatpush1.msra.mxu0 0.0
      %1089 = vmatprep.subr.mxu0 0.0
      %1090 = vmatpush1.msra.mxu0 0.0
      %1091 = vmatprep.subr.mxu0 0.0
      %1092 = vmatpush1.msra.mxu0 0.0
      %1093 = vmatprep.subr.mxu0 0.0
      %1094 = vmatpush1.msra.mxu0 0.0
      %1095 = vmatprep.subr.mxu0 0.0
      %1096 = vmatpush1.msra.mxu0 0.0
      %1097 = vmatprep.subr.mxu0 0.0
      %1098 = vmatpush1.msra.mxu0 0.0
      %1099 = vmatprep.subr.mxu0 0.0
      %1100 = vmatpush1.msra.mxu0 0.0
      %1101 = vmatprep.subr.mxu0 0.0
      %1102 = vmatpush1.msra.mxu0 0.0
      %1103 = vmatprep.subr.mxu0 0.0
      %1104 = vmatpush1.msra.mxu0 0.0
      %1105 = vmatprep.subr.mxu0 0.0
      %1106 = vmatpush1.msra.mxu0 0.0
      %1107 = vmatprep.subr.mxu0 0.0
      %1108 = vmatpush1.msra.mxu0 0.0
      %1109 = vmatprep.subr.mxu0 0.0
      %1110 = vmatpush1.msra.mxu0 0.0
      %1111 = vmatprep.subr.mxu0 0.0
      %1112 = vmatpush1.msra.mxu0 0.0
      %1113 = vmatprep.subr.mxu0 0.0
      %1114 = vmatpush1.msra.mxu0 0.0
      %1115 = vmatprep.subr.mxu0 0.0
      %1116 = vmatpush1.msra.mxu0 0.0
      %1117 = vmatprep.subr.mxu0 0.0
      %1118 = vmatpush1.msra.mxu0 0.0
      %1119 = vmatprep.mubr.f32.mxu0 0.0
      %1120 = vmatmul.mubr.f32.gmra.mrb[0].mxu0 %v1053
      %v1121 = vpop.f32.mrb[0].mxu0
      %v1122 = vadd.f32 0.0, %v1121
      %v1123 = vpop.f32.mrb[0].mxu0
      %1124 = vdwg.mxu0
      %1126 = vrot.lane.b32.xlu0 %v1122, 24
      %v1127 = vpop.permute.xlu0 %1126
      %vm1129 = vcmask 261312
      %1130 = vst.msk [vmem:[%s598] sm:$0xff] %vm1129, %v1127
    $region78: #{tpu_custom_call.1} parent=1 // loop_footer
      %s429 = sadd.s32 1, %s425
    $region79: #{tpu_custom_call.1} parent=1 // loop_footer_branch
      %424 = sbr.rel target = $region75
    $region80: #{tpu_custom_call.1} parent=1 // loop_exit
      _
    %v1131 = vld [vmem:[#allocation5] sm:$0xff]
    %v1132 = vld [vmem:[#allocation5 + $0x8] sm:$0xff]
    %v1133 = vld [vmem:[%s9] sm:$0xff]
    %v1134 = vld [vmem:[%s9 + $0x8] sm:$0xff]
    %v1135 = vld [vmem:[%s9 + $0x10] sm:$0xff]
    %v1136 = vld [vmem:[%s9 + $0x18] sm:$0xff]
    %v1138 = vlaneseq
    %v1139 = vshrl.u32 %v1138, 7
    %v1140 = vsub.s32 0, %v1139
    %v1141 = vrot.slane %v141, %v1140
    %v1144 = vsel %vm152, %v1131, 0
    %v1147 = vsel %vm152, %v1132, 0
    %1149 = vmatprep.subr.mxu0 0.0
    %1150 = vmatpush1.msra.mxu0 %v1133
    %1151 = vmatprep.subr.mxu0 0.0
    %1152 = vmatpush1.msra.mxu0 %v1134
    %1153 = vmatprep.subr.mxu0 0.0
    %1154 = vmatpush1.msra.mxu0 %v1135
    %1155 = vmatprep.subr.mxu0 0.0
    %1156 = vmatpush1.msra.mxu0 %v1136
    %1157 = vmatprep.subr.mxu0 0.0
    %1158 = vmatpush1.msra.mxu0 0.0
    %1159 = vmatprep.subr.mxu0 0.0
    %1160 = vmatpush1.msra.mxu0 0.0
    %1161 = vmatprep.subr.mxu0 0.0
    %1162 = vmatpush1.msra.mxu0 0.0
    %1163 = vmatprep.subr.mxu0 0.0
    %1164 = vmatpush1.msra.mxu0 0.0
    %1165 = vmatprep.subr.mxu0 0.0
    %1166 = vmatpush1.msra.mxu0 0.0
    %1167 = vmatprep.subr.mxu0 0.0
    %1168 = vmatpush1.msra.mxu0 0.0
    %1169 = vmatprep.subr.mxu0 0.0
    %1170 = vmatpush1.msra.mxu0 0.0
    %1171 = vmatprep.subr.mxu0 0.0
    %1172 = vmatpush1.msra.mxu0 0.0
    %1173 = vmatprep.subr.mxu0 0.0
    %1174 = vmatpush1.msra.mxu0 0.0
    %1175 = vmatprep.subr.mxu0 0.0
    %1176 = vmatpush1.msra.mxu0 0.0
    %1177 = vmatprep.subr.mxu0 0.0
    %1178 = vmatpush1.msra.mxu0 0.0
    %1179 = vmatprep.subr.mxu0 0.0
    %1180 = vmatpush1.msra.mxu0 0.0
    %1181 = vmatprep.subr.mxu0 0.0
    %1182 = vmatpush1.msra.mxu0 0.0
    %1183 = vmatprep.subr.mxu0 0.0
    %1184 = vmatpush1.msra.mxu0 0.0
    %1185 = vmatprep.subr.mxu0 0.0
    %1186 = vmatpush1.msra.mxu0 0.0
    %1187 = vmatprep.subr.mxu0 0.0
    %1188 = vmatpush1.msra.mxu0 0.0
    %1189 = vmatprep.subr.mxu0 0.0
    %1190 = vmatpush1.msra.mxu0 0.0
    %1191 = vmatprep.subr.mxu0 0.0
    %1192 = vmatpush1.msra.mxu0 0.0
    %1193 = vmatprep.subr.mxu0 0.0
    %1194 = vmatpush1.msra.mxu0 0.0
    %1195 = vmatprep.subr.mxu0 0.0
    %1196 = vmatpush1.msra.mxu0 0.0
    %1197 = vmatprep.subr.mxu0 0.0
    %1198 = vmatpush1.msra.mxu0 0.0
    %1199 = vmatprep.subr.mxu0 0.0
    %1200 = vmatpush1.msra.mxu0 0.0
    %1201 = vmatprep.subr.mxu0 0.0
    %1202 = vmatpush1.msra.mxu0 0.0
    %1203 = vmatprep.subr.mxu0 0.0
    %1204 = vmatpush1.msra.mxu0 0.0
    %1205 = vmatprep.subr.mxu0 0.0
    %1206 = vmatpush1.msra.mxu0 0.0
    %1207 = vmatprep.subr.mxu0 0.0
    %1208 = vmatpush1.msra.mxu0 0.0
    %1209 = vmatprep.subr.mxu0 0.0
    %1210 = vmatpush1.msra.mxu0 0.0
    %1211 = vmatprep.subr.mxu0 0.0
    %1212 = vmatpush1.msra.mxu0 0.0
    %1213 = vmatprep.mubr.f32.mxu0 0.0
    %1214 = vmatmul.mubr.f32.gmra.mrb[0].mxu0 %v1144
    %v1215 = vpop.f32.mrb[0].mxu0
    %v1216 = vadd.f32 %v1141, %v1215
    %v1217 = vpop.f32.mrb[0].mxu0
    %1218 = vmatprep.mubr.f32.mxu0 0.0
    %1219 = vmatmul.mubr.f32.gmra.mrb[0].mxu0 %v1147
    %v1220 = vpop.f32.mrb[0].mxu0
    %v1221 = vadd.f32 %v1141, %v1220
    %v1222 = vpop.f32.mrb[0].mxu0
    %1223 = vdwg.mxu0
    %1224 = vst.msk [vmem:[#allocation18] sm:$0xff] %vm152, %v1216
    %1225 = vst.msk [vmem:[#allocation18 + $0x8] sm:$0xff] %vm152, %v1221
    // Predicated region
    $region81: #{tpu_custom_call.1} parent=1 // pred_check
      _
    $region82: #{tpu_custom_call.1} parent=1 // pred_check_branch
      %1227 = sbr.rel (0) target = $region84
    $region83: #{tpu_custom_call.1} parent=1 // pred_region
      %s1229 = ssub.s32 256, 256
      %1230 = vsyncadd [#allocation8], %s1229
      %s1231 = sshll.u32 [#allocation18], 4
      %s1232 = int_to_ptr.vmem [resolvable:$true] %s1231
      %1237 = dma.vmem_to_hbm [thread:$0]  %s1232, 256, %s11, [#allocation8], 128, 128, 8
    $region84: #{tpu_custom_call.1} parent=1 // pred_fallthru
      _
    // Predicated region
    $region85: #{tpu_custom_call.1} parent=1 // pred_check
      _
    $region86: #{tpu_custom_call.1} parent=1 // pred_check_branch
      %1239 = sbr.rel (0) target = $region88
    $region87: #{tpu_custom_call.1} parent=1 // pred_region
      %1240 = dma.done [#allocation8], 256
    $region88: #{tpu_custom_call.1} parent=1 // pred_fallthru
      _
    %1241 = vsyncpa [#allocation7], 1
    %1242 = vsyncpa [#allocation10], 1
    %1243 = vsyncpa [#allocation13], 1
    %1244 = vsyncpa [#allocation16], 1
    %1245 = vsyncpa [#allocation8], 1

</llo_original>
